<compile_context>
chip_gen: v6e
topology: v6e:2x2x1
jax: 0.10.0
libtpu: 0.0.40
codegen_flags: <defaults>
</compile_context>

<pallas_src>
import functools

import jax
import jax.numpy as jnp
from jax.experimental import pallas as pl
from jax.experimental.pallas import tpu as pltpu

# --- hyperparameters (small synthetic config consistent with the module) -----
IN_CHANNELS = 8          # in_channels (must be even)
HALF = IN_CHANNELS // 2  # half_channels
HID = 32                 # phoneme_embedding_dim (WN hidden width)
K = 5                    # kernel_size
DILATION_RATE = 1        # dilation_rate
N_LAYERS = 4             # n_resblocks

B = 2
T = 16


# ----------------------------- Pallas kernel ---------------------------------
def _coupling_kernel(x_ref, mask_ref,
                     w_pre_ref, b_pre_ref,
                     w_in_ref, b_in_ref,
                     w_rs_ref, b_rs_ref,
                     w_post_ref, b_post_ref,
                     out_ref,
                     *, t, reverse):
    cdt = w_pre_ref.dtype                       # MXU operand dtype (f32 or bf16)

    x0 = x_ref[0].astype(jnp.float32)           # (HALF, T)  -- passthrough half
    x1 = x_ref[1].astype(jnp.float32)           # (HALF, T)  -- transformed half
    mask = mask_ref[...].astype(jnp.float32)    # (1, T)
    # Hoist the mask broadcast once (JAX does not CSE broadcast_in_dim).
    mask_h = jnp.broadcast_to(mask, (HID, t))   # (HID, T)

    # pre: 1x1 conv -> (HID, HALF) @ (HALF, T), f32 accumulation.
    h = (jnp.dot(w_pre_ref[...], x0.astype(cdt),
                 preferred_element_type=jnp.float32)
         + b_pre_ref[...]) * mask_h             # (HID, T)

    out_acc = jnp.zeros((HID, t), jnp.float32)
    cur = h
    for i in range(N_LAYERS):
        d = DILATION_RATE ** i
        pad = ((K - 1) * d) // 2

        # In-register zero-padded taps along the lane (T) axis, then the K taps
        # are stacked along sublanes and fused into ONE matmul:
        #   (2*HID, K*HID) @ (K*HID, T)
        cur_c = cur.astype(cdt)
        if pad > 0:
            zer = jnp.zeros((HID, pad), cdt)
            cur_pad = jnp.concatenate([zer, cur_c, zer], axis=1)  # (HID, T+2*pad)
        else:
            cur_pad = cur_c
        slab = jnp.concatenate(
            [cur_pad[:, k * d:k * d + t] for k in range(K)], axis=0)  # (K*HID, T)

        x_in = (jnp.dot(w_in_ref[i], slab, preferred_element_type=jnp.float32)
                + b_in_ref[i])                  # (2*HID, T)

        # fused_add_tanh_sigmoid_multiply (g = 0, no speaker conditioning).
        # sigmoid(x) == 0.5*(1 + tanh(0.5*x)) -> single EUP push per element.
        ta = jnp.tanh(x_in[:HID])
        sg = 0.5 * (1.0 + jnp.tanh(0.5 * x_in[HID:]))
        acts = ta * sg                          # (HID, T)

        rs = (jnp.dot(w_rs_ref[i], acts.astype(cdt),
                      preferred_element_type=jnp.float32)
              + b_rs_ref[i])                    # (2*HID, T)
        if i < N_LAYERS - 1:
            cur = (cur + rs[:HID]) * mask_h
            out_acc = out_acc + rs[HID:]
        else:
            out_acc = out_acc + rs[:HID]

    h_wn = out_acc * mask_h

    # post: 1x1 conv (zero-initialized per __init__) -> (HALF, HID) @ (HID, T)
    x1_mean = (jnp.dot(w_post_ref[...], h_wn.astype(cdt),
                       preferred_element_type=jnp.float32)
               + b_post_ref[...]) * mask

    if reverse:
        x1_new = (x1 - x1_mean) * mask
    else:
        x1_new = x1_mean + x1 * mask

    # Only the x1 half is written; the x0 half of the (aliased) output buffer is
    # never touched so it keeps the input values -> zero passthrough traffic.
    out_ref[...] = x1_new.astype(out_ref.dtype)


# ------------------------------ wrapper ---------------------------------------
def residual_coupling_layer(x, x_mask, params, *, reverse=False,
                            compute_dtype=jnp.float32):
    """x: (B, IN_CHANNELS, T), x_mask: (B, 1, T) -> (B, IN_CHANNELS, T).

    compute_dtype=jnp.bfloat16 is recommended on v6e/v7x (f32 on v5e).
    """
    b_, c_, t_ = x.shape
    assert c_ == IN_CHANNELS

    # Expose the channel halves as their own (aligned) dim so the output block
    # can cover exactly the x1 half: (B, C, T) -> (B, 2, HALF, T) (free reshape).
    x4 = x.reshape(b_, 2, HALF, t_)

    # Cast MXU operands once here (halves weight DMA bytes in bf16 mode);
    # biases stay f32.  w_in is flattened so that tap k / channel c sits at
    # lane-block k*HID + c of the fused contraction (from a PyTorch Conv1d
    # weight (out, in, k) this is weight.transpose(0, 2, 1)).
    w_pre = params["w_pre"].astype(compute_dtype)                       # (HID, HALF)
    w_in = params["w_in"].reshape(N_LAYERS, 2 * HID, K * HID).astype(compute_dtype)
    w_rs = params["w_rs"].astype(compute_dtype)                         # (L, 2H, HID)
    w_post = params["w_post"].astype(compute_dtype)                     # (HALF, HID)
    b_pre = params["b_pre"].astype(jnp.float32)
    b_in = params["b_in"].astype(jnp.float32)
    b_rs = params["b_rs"].astype(jnp.float32)
    b_post = params["b_post"].astype(jnp.float32)

    def wspec(arr):   # grid-invariant full-array block
        nd = arr.ndim
        return pl.BlockSpec(arr.shape, lambda i, _n=nd: (0,) * _n)

    kernel = functools.partial(_coupling_kernel, t=t_, reverse=reverse)

    out4 = pl.pallas_call(
        kernel,
        out_shape=jax.ShapeDtypeStruct((b_, 2, HALF, t_), x.dtype),
        grid=(b_,),
        in_specs=[
            pl.BlockSpec((None, 2, HALF, t_), lambda i: (i, 0, 0, 0)),
            pl.BlockSpec((None, 1, t_), lambda i: (i, 0, 0)),
            wspec(w_pre), wspec(b_pre),
            wspec(w_in), wspec(b_in),
            wspec(w_rs), wspec(b_rs),
            wspec(w_post), wspec(b_post),
        ],
        # Output covers only the x1 half-block; x0 is preserved via aliasing.
        out_specs=pl.BlockSpec((None, None, HALF, t_), lambda i: (i, 1, 0, 0)),
        input_output_aliases={0: 0},
        compiler_params=pltpu.CompilerParams(
            dimension_semantics=("parallel",),
            vmem_limit_bytes=32 * 1024 * 1024),
    )(x4, x_mask, w_pre, b_pre, w_in, b_in, w_rs, b_rs, w_post, b_post)

    return out4.reshape(b_, c_, t_)


# --------------------------- pure-JAX reference --------------------------------
def reference_forward(x, x_mask, params, *, reverse=False):
    t_ = x.shape[-1]
    x0, x1 = x[:, :HALF], x[:, HALF:]
    h = (jnp.einsum('oc,bct->bot', params["w_pre"], x0) + params["b_pre"]) * x_mask
    out_acc = jnp.zeros_like(h)
    cur = h
    for i in range(N_LAYERS):
        d = DILATION_RATE ** i
        pad = ((K - 1) * d) // 2
        xp = jnp.pad(cur, ((0, 0), (0, 0), (pad, pad)))
        x_in = jnp.zeros((x.shape[0], 2 * HID, t_)) + params["b_in"][i]
        for k in range(K):
            xs = xp[:, :, k * d:k * d + t_]
            x_in = x_in + jnp.einsum('oc,bct->bot', params["w_in"][i, :, k, :], xs)
        acts = jnp.tanh(x_in[:, :HID]) * jax.nn.sigmoid(x_in[:, HID:])
        rs = jnp.einsum('oc,bct->bot', params["w_rs"][i], acts) + params["b_rs"][i]
        if i < N_LAYERS - 1:
            cur = (cur + rs[:, :HID]) * x_mask
            out_acc = out_acc + rs[:, HID:]
        else:
            out_acc = out_acc + rs[:, :HID]
    h_wn = out_acc * x_mask
    x1_mean = (jnp.einsum('oc,bct->bot', params["w_post"], h_wn)
               + params["b_post"]) * x_mask
    if reverse:
        x1_new = (x1 - x1_mean) * x_mask
    else:
        x1_new = x1_mean + x1 * x_mask
    return jnp.concatenate([x0, x1_new], axis=1)


# ------------------------------ param init -------------------------------------
def init_params(key):
    ks = jax.random.split(key, 6)
    s = 0.1
    w_pre = jax.random.normal(ks[0], (HID, HALF), jnp.float32) * s
    b_pre = jax.random.normal(ks[1], (HID, 1), jnp.float32) * s
    w_in = jax.random.normal(ks[2], (N_LAYERS, 2 * HID, K, HID), jnp.float32) * s
    b_in = jax.random.normal(ks[3], (N_LAYERS, 2 * HID, 1), jnp.float32) * s
    w_rs = jax.random.normal(ks[4], (N_LAYERS, 2 * HID, HID), jnp.float32) * s
    b_rs = jax.random.normal(ks[5], (N_LAYERS, 2 * HID, 1), jnp.float32) * s
    # The last WN res_skip layer only has HID output channels; zero the padded half.
    w_rs = w_rs.at[-1, HID:, :].set(0.0)
    b_rs = b_rs.at[-1, HID:, :].set(0.0)
    # post conv is zero-initialized in __init__ (weight.data.zero_(), bias.data.zero_()).
    w_post = jnp.zeros((HALF, HID), jnp.float32)
    b_post = jnp.zeros((HALF, 1), jnp.float32)
    return dict(w_pre=w_pre, b_pre=b_pre, w_in=w_in, b_in=b_in,
                w_rs=w_rs, b_rs=b_rs, w_post=w_post, b_post=b_post)


# --------------------------------- main -----------------------------------------
if __name__ == "__main__":
    key = jax.random.PRNGKey(0)
    kx, kp = jax.random.split(key, 2)

    x = jax.random.normal(kx, (B, IN_CHANNELS, T), jnp.float32)
    lengths = jnp.array([T, T - 4])
    x_mask = (jnp.arange(T)[None, :] < lengths[:, None]).astype(jnp.float32)[:, None, :]

    params = init_params(kp)

    # forward (reverse=False), f32
    out_fwd = jax.block_until_ready(
        residual_coupling_layer(x, x_mask, params, reverse=False))
    ref_fwd = reference_forward(x, x_mask, params, reverse=False)
    assert jnp.allclose(out_fwd, ref_fwd, atol=1e-5, rtol=1e-5), "forward mismatch"

    # inverse (reverse=True), f32
    out_rev = jax.block_until_ready(
        residual_coupling_layer(x, x_mask, params, reverse=True))
    ref_rev = reference_forward(x, x_mask, params, reverse=True)
    assert jnp.allclose(out_rev, ref_rev, atol=1e-5, rtol=1e-5), "reverse mismatch"

    # Extra check with non-zero post weights so the pre/WN/post path is exercised
    # end-to-end (the __init__-faithful zero post makes x1_mean == 0).
    params_nz = dict(params)
    params_nz["w_post"] = jax.random.normal(jax.random.PRNGKey(1), (HALF, HID), jnp.float32) * 0.1
    params_nz["b_post"] = jax.random.normal(jax.random.PRNGKey(2), (HALF, 1), jnp.float32) * 0.1
    out_nz = jax.block_until_ready(
        residual_coupling_layer(x, x_mask, params_nz, reverse=False))
    ref_nz = reference_forward(x, x_mask, params_nz, reverse=False)
    assert jnp.allclose(out_nz, ref_nz, atol=1e-4, rtol=1e-4), "WN path mismatch"

    out_nz_rev = jax.block_until_ready(
        residual_coupling_layer(x, x_mask, params_nz, reverse=True))
    ref_nz_rev = reference_forward(x, x_mask, params_nz, reverse=True)
    assert jnp.allclose(out_nz_rev, ref_nz_rev, atol=1e-4, rtol=1e-4), "WN reverse mismatch"

    # bf16 MXU-operand mode (v6e/v7x optimization): f32 accumulation, looser tolerance.
    out_bf16 = jax.block_until_ready(
        residual_coupling_layer(x, x_mask, params_nz, reverse=False,
                                compute_dtype=jnp.bfloat16))
    assert jnp.allclose(out_bf16, ref_nz, atol=5e-2, rtol=5e-2), "bf16 path mismatch"

    print("KERNEL_OK")
</pallas_src>

<mosaic_0001>
module attributes {stable_mosaic.version = 11 : i64} {
  func.func @_coupling_kernel(%arg0: i32, %arg1: memref<1x2x4x16xf32, #tpu.memory_space<vmem>>, %arg2: memref<1x1x16xf32, #tpu.memory_space<vmem>>, %arg3: memref<32x4xf32, #tpu.memory_space<vmem>>, %arg4: memref<32x1xf32, #tpu.memory_space<vmem>>, %arg5: memref<4x64x160xf32, #tpu.memory_space<vmem>>, %arg6: memref<4x64x1xf32, #tpu.memory_space<vmem>>, %arg7: memref<4x64x32xf32, #tpu.memory_space<vmem>>, %arg8: memref<4x64x1xf32, #tpu.memory_space<vmem>>, %arg9: memref<4x32xf32, #tpu.memory_space<vmem>>, %arg10: memref<4x1xf32, #tpu.memory_space<vmem>>, %arg11: memref<1x1x4x16xf32, #tpu.memory_space<vmem>>) attributes {dimension_semantics = [#tpu.dimension_semantics<parallel>], iteration_bounds = array<i64: 2>, scalar_prefetch = 0 : i64, scratch_operands = 0 : i64, tpu.core_type = #tpu.core_type<tc>, window_params = [{transform_indices = @transform_0, window_bounds = array<i64: 1, 2, 4, 16>}, {transform_indices = @transform_1, window_bounds = array<i64: 1, 1, 16>}, {pipeline_mode = #tpu.pipeline_mode<synchronous>, transform_indices = @transform_2, window_bounds = array<i64: 32, 4>}, {pipeline_mode = #tpu.pipeline_mode<synchronous>, transform_indices = @transform_3, window_bounds = array<i64: 32, 1>}, {pipeline_mode = #tpu.pipeline_mode<synchronous>, transform_indices = @transform_4, window_bounds = array<i64: 4, 64, 160>}, {pipeline_mode = #tpu.pipeline_mode<synchronous>, transform_indices = @transform_5, window_bounds = array<i64: 4, 64, 1>}, {pipeline_mode = #tpu.pipeline_mode<synchronous>, transform_indices = @transform_6, window_bounds = array<i64: 4, 64, 32>}, {pipeline_mode = #tpu.pipeline_mode<synchronous>, transform_indices = @transform_7, window_bounds = array<i64: 4, 64, 1>}, {pipeline_mode = #tpu.pipeline_mode<synchronous>, transform_indices = @transform_8, window_bounds = array<i64: 4, 32>}, {pipeline_mode = #tpu.pipeline_mode<synchronous>, transform_indices = @transform_9, window_bounds = array<i64: 4, 1>}, {transform_indices = @transform_10, window_bounds = array<i64: 1, 1, 4, 16>}]} {
    %c0 = arith.constant 0 : index
    %c0_0 = arith.constant 0 : index
    %c0_1 = arith.constant 0 : index
    %c0_2 = arith.constant 0 : index
    %0 = vector.load %arg1[%c0, %c0_0, %c0_1, %c0_2] : memref<1x2x4x16xf32, #tpu.memory_space<vmem>>, vector<1x1x4x16xf32>
    %1 = vector.shape_cast %0 : vector<1x1x4x16xf32> to vector<4x16xf32>
    %c0_3 = arith.constant 0 : index
    %c1 = arith.constant 1 : index
    %c0_4 = arith.constant 0 : index
    %c0_5 = arith.constant 0 : index
    %2 = vector.load %arg1[%c0_3, %c1, %c0_4, %c0_5] : memref<1x2x4x16xf32, #tpu.memory_space<vmem>>, vector<1x1x4x16xf32>
    %3 = vector.shape_cast %2 : vector<1x1x4x16xf32> to vector<4x16xf32>
    %c0_6 = arith.constant 0 : index
    %c0_7 = arith.constant 0 : index
    %c0_8 = arith.constant 0 : index
    %4 = vector.load %arg2[%c0_6, %c0_7, %c0_8] : memref<1x1x16xf32, #tpu.memory_space<vmem>>, vector<1x1x16xf32>
    %5 = vector.shape_cast %4 : vector<1x1x16xf32> to vector<1x16xf32>
    %6 = vector.shape_cast %5 : vector<1x16xf32> to vector<1x16xf32>
    %7 = vector.broadcast %6 : vector<1x16xf32> to vector<32x16xf32>
    %c0_9 = arith.constant 0 : index
    %c0_10 = arith.constant 0 : index
    %8 = vector.load %arg3[%c0_9, %c0_10] : memref<32x4xf32, #tpu.memory_space<vmem>>, vector<32x4xf32>
    %cst = arith.constant dense<0.000000e+00> : vector<32x16xf32>
    %9 = tpu.matmul %8, %1, %cst {dimension_numbers = #tpu.dot_dimension_numbers<[1], [0], [0], [1], [0, 0, 1, 1], [], []>} : vector<32x4xf32>, vector<4x16xf32>, vector<32x16xf32> -> vector<32x16xf32>
    %c0_11 = arith.constant 0 : index
    %c0_12 = arith.constant 0 : index
    %10 = vector.load %arg4[%c0_11, %c0_12] : memref<32x1xf32, #tpu.memory_space<vmem>>, vector<32x1xf32>
    %11 = vector.broadcast %10 : vector<32x1xf32> to vector<32x16xf32>
    %12 = arith.addf %9, %11 : vector<32x16xf32>
    %13 = arith.mulf %12, %7 : vector<32x16xf32>
    %cst_13 = arith.constant 0.000000e+00 : f32
    %14 = vector.broadcast %cst_13 : f32 to vector<32x16xf32>
    %cst_14 = arith.constant 0.000000e+00 : f32
    %15 = vector.broadcast %cst_14 : f32 to vector<32x2xf32>
    %16 = tpu.concatenate %15, %13, %15 in 1 : vector<32x2xf32>, vector<32x16xf32>, vector<32x2xf32> -> vector<32x20xf32>
    %17 = vector.extract_strided_slice %16 {offsets = [0, 0], sizes = [32, 16], strides = [1, 1]} : vector<32x20xf32> to vector<32x16xf32>
    %18 = vector.extract_strided_slice %16 {offsets = [0, 1], sizes = [32, 16], strides = [1, 1]} : vector<32x20xf32> to vector<32x16xf32>
    %19 = vector.extract_strided_slice %16 {offsets = [0, 2], sizes = [32, 16], strides = [1, 1]} : vector<32x20xf32> to vector<32x16xf32>
    %20 = vector.extract_strided_slice %16 {offsets = [0, 3], sizes = [32, 16], strides = [1, 1]} : vector<32x20xf32> to vector<32x16xf32>
    %21 = vector.extract_strided_slice %16 {offsets = [0, 4], sizes = [32, 16], strides = [1, 1]} : vector<32x20xf32> to vector<32x16xf32>
    %22 = tpu.concatenate %17, %18, %19, %20, %21 in 0 : vector<32x16xf32>, vector<32x16xf32>, vector<32x16xf32>, vector<32x16xf32>, vector<32x16xf32> -> vector<160x16xf32>
    %c0_15 = arith.constant 0 : index
    %c0_16 = arith.constant 0 : index
    %c0_17 = arith.constant 0 : index
    %23 = vector.load %arg5[%c0_15, %c0_16, %c0_17] : memref<4x64x160xf32, #tpu.memory_space<vmem>>, vector<1x64x160xf32>
    %24 = vector.shape_cast %23 : vector<1x64x160xf32> to vector<64x160xf32>
    %cst_18 = arith.constant dense<0.000000e+00> : vector<64x16xf32>
    %25 = tpu.matmul %24, %22, %cst_18 {dimension_numbers = #tpu.dot_dimension_numbers<[1], [0], [0], [1], [0, 0, 1, 1], [], []>} : vector<64x160xf32>, vector<160x16xf32>, vector<64x16xf32> -> vector<64x16xf32>
    %c0_19 = arith.constant 0 : index
    %c0_20 = arith.constant 0 : index
    %c0_21 = arith.constant 0 : index
    %26 = vector.load %arg6[%c0_19, %c0_20, %c0_21] : memref<4x64x1xf32, #tpu.memory_space<vmem>>, vector<1x64x1xf32>
    %27 = vector.shape_cast %26 : vector<1x64x1xf32> to vector<64x1xf32>
    %28 = vector.broadcast %27 : vector<64x1xf32> to vector<64x16xf32>
    %29 = arith.addf %25, %28 : vector<64x16xf32>
    %30 = vector.extract_strided_slice %29 {offsets = [0, 0], sizes = [32, 16], strides = [1, 1]} : vector<64x16xf32> to vector<32x16xf32>
    %31 = math.tanh %30 : vector<32x16xf32>
    %32 = vector.extract_strided_slice %29 {offsets = [32, 0], sizes = [32, 16], strides = [1, 1]} : vector<64x16xf32> to vector<32x16xf32>
    %cst_22 = arith.constant 5.000000e-01 : f32
    %33 = vector.broadcast %cst_22 : f32 to vector<32x16xf32>
    %34 = arith.mulf %33, %32 : vector<32x16xf32>
    %35 = math.tanh %34 : vector<32x16xf32>
    %cst_23 = arith.constant 1.000000e+00 : f32
    %36 = vector.broadcast %cst_23 : f32 to vector<32x16xf32>
    %37 = arith.addf %36, %35 : vector<32x16xf32>
    %cst_24 = arith.constant 5.000000e-01 : f32
    %38 = vector.broadcast %cst_24 : f32 to vector<32x16xf32>
    %39 = arith.mulf %38, %37 : vector<32x16xf32>
    %40 = arith.mulf %31, %39 : vector<32x16xf32>
    %c0_25 = arith.constant 0 : index
    %c0_26 = arith.constant 0 : index
    %c0_27 = arith.constant 0 : index
    %41 = vector.load %arg7[%c0_25, %c0_26, %c0_27] : memref<4x64x32xf32, #tpu.memory_space<vmem>>, vector<1x64x32xf32>
    %42 = vector.shape_cast %41 : vector<1x64x32xf32> to vector<64x32xf32>
    %cst_28 = arith.constant dense<0.000000e+00> : vector<64x16xf32>
    %43 = tpu.matmul %42, %40, %cst_28 {dimension_numbers = #tpu.dot_dimension_numbers<[1], [0], [0], [1], [0, 0, 1, 1], [], []>} : vector<64x32xf32>, vector<32x16xf32>, vector<64x16xf32> -> vector<64x16xf32>
    %c0_29 = arith.constant 0 : index
    %c0_30 = arith.constant 0 : index
    %c0_31 = arith.constant 0 : index
    %44 = vector.load %arg8[%c0_29, %c0_30, %c0_31] : memref<4x64x1xf32, #tpu.memory_space<vmem>>, vector<1x64x1xf32>
    %45 = vector.shape_cast %44 : vector<1x64x1xf32> to vector<64x1xf32>
    %46 = vector.broadcast %45 : vector<64x1xf32> to vector<64x16xf32>
    %47 = arith.addf %43, %46 : vector<64x16xf32>
    %48 = vector.extract_strided_slice %47 {offsets = [0, 0], sizes = [32, 16], strides = [1, 1]} : vector<64x16xf32> to vector<32x16xf32>
    %49 = arith.addf %13, %48 : vector<32x16xf32>
    %50 = arith.mulf %49, %7 : vector<32x16xf32>
    %51 = vector.extract_strided_slice %47 {offsets = [32, 0], sizes = [32, 16], strides = [1, 1]} : vector<64x16xf32> to vector<32x16xf32>
    %52 = arith.addf %14, %51 : vector<32x16xf32>
    %cst_32 = arith.constant 0.000000e+00 : f32
    %53 = vector.broadcast %cst_32 : f32 to vector<32x2xf32>
    %54 = tpu.concatenate %53, %50, %53 in 1 : vector<32x2xf32>, vector<32x16xf32>, vector<32x2xf32> -> vector<32x20xf32>
    %55 = vector.extract_strided_slice %54 {offsets = [0, 0], sizes = [32, 16], strides = [1, 1]} : vector<32x20xf32> to vector<32x16xf32>
    %56 = vector.extract_strided_slice %54 {offsets = [0, 1], sizes = [32, 16], strides = [1, 1]} : vector<32x20xf32> to vector<32x16xf32>
    %57 = vector.extract_strided_slice %54 {offsets = [0, 2], sizes = [32, 16], strides = [1, 1]} : vector<32x20xf32> to vector<32x16xf32>
    %58 = vector.extract_strided_slice %54 {offsets = [0, 3], sizes = [32, 16], strides = [1, 1]} : vector<32x20xf32> to vector<32x16xf32>
    %59 = vector.extract_strided_slice %54 {offsets = [0, 4], sizes = [32, 16], strides = [1, 1]} : vector<32x20xf32> to vector<32x16xf32>
    %60 = tpu.concatenate %55, %56, %57, %58, %59 in 0 : vector<32x16xf32>, vector<32x16xf32>, vector<32x16xf32>, vector<32x16xf32>, vector<32x16xf32> -> vector<160x16xf32>
    %c1_33 = arith.constant 1 : index
    %c0_34 = arith.constant 0 : index
    %c0_35 = arith.constant 0 : index
    %61 = vector.load %arg5[%c1_33, %c0_34, %c0_35] : memref<4x64x160xf32, #tpu.memory_space<vmem>>, vector<1x64x160xf32>
    %62 = vector.shape_cast %61 : vector<1x64x160xf32> to vector<64x160xf32>
    %cst_36 = arith.constant dense<0.000000e+00> : vector<64x16xf32>
    %63 = tpu.matmul %62, %60, %cst_36 {dimension_numbers = #tpu.dot_dimension_numbers<[1], [0], [0], [1], [0, 0, 1, 1], [], []>} : vector<64x160xf32>, vector<160x16xf32>, vector<64x16xf32> -> vector<64x16xf32>
    %c1_37 = arith.constant 1 : index
    %c0_38 = arith.constant 0 : index
    %c0_39 = arith.constant 0 : index
    %64 = vector.load %arg6[%c1_37, %c0_38, %c0_39] : memref<4x64x1xf32, #tpu.memory_space<vmem>>, vector<1x64x1xf32>
    %65 = vector.shape_cast %64 : vector<1x64x1xf32> to vector<64x1xf32>
    %66 = vector.broadcast %65 : vector<64x1xf32> to vector<64x16xf32>
    %67 = arith.addf %63, %66 : vector<64x16xf32>
    %68 = vector.extract_strided_slice %67 {offsets = [0, 0], sizes = [32, 16], strides = [1, 1]} : vector<64x16xf32> to vector<32x16xf32>
    %69 = math.tanh %68 : vector<32x16xf32>
    %70 = vector.extract_strided_slice %67 {offsets = [32, 0], sizes = [32, 16], strides = [1, 1]} : vector<64x16xf32> to vector<32x16xf32>
    %cst_40 = arith.constant 5.000000e-01 : f32
    %71 = vector.broadcast %cst_40 : f32 to vector<32x16xf32>
    %72 = arith.mulf %71, %70 : vector<32x16xf32>
    %73 = math.tanh %72 : vector<32x16xf32>
    %cst_41 = arith.constant 1.000000e+00 : f32
    %74 = vector.broadcast %cst_41 : f32 to vector<32x16xf32>
    %75 = arith.addf %74, %73 : vector<32x16xf32>
    %cst_42 = arith.constant 5.000000e-01 : f32
    %76 = vector.broadcast %cst_42 : f32 to vector<32x16xf32>
    %77 = arith.mulf %76, %75 : vector<32x16xf32>
    %78 = arith.mulf %69, %77 : vector<32x16xf32>
    %c1_43 = arith.constant 1 : index
    %c0_44 = arith.constant 0 : index
    %c0_45 = arith.constant 0 : index
    %79 = vector.load %arg7[%c1_43, %c0_44, %c0_45] : memref<4x64x32xf32, #tpu.memory_space<vmem>>, vector<1x64x32xf32>
    %80 = vector.shape_cast %79 : vector<1x64x32xf32> to vector<64x32xf32>
    %cst_46 = arith.constant dense<0.000000e+00> : vector<64x16xf32>
    %81 = tpu.matmul %80, %78, %cst_46 {dimension_numbers = #tpu.dot_dimension_numbers<[1], [0], [0], [1], [0, 0, 1, 1], [], []>} : vector<64x32xf32>, vector<32x16xf32>, vector<64x16xf32> -> vector<64x16xf32>
    %c1_47 = arith.constant 1 : index
    %c0_48 = arith.constant 0 : index
    %c0_49 = arith.constant 0 : index
    %82 = vector.load %arg8[%c1_47, %c0_48, %c0_49] : memref<4x64x1xf32, #tpu.memory_space<vmem>>, vector<1x64x1xf32>
    %83 = vector.shape_cast %82 : vector<1x64x1xf32> to vector<64x1xf32>
    %84 = vector.broadcast %83 : vector<64x1xf32> to vector<64x16xf32>
    %85 = arith.addf %81, %84 : vector<64x16xf32>
    %86 = vector.extract_strided_slice %85 {offsets = [0, 0], sizes = [32, 16], strides = [1, 1]} : vector<64x16xf32> to vector<32x16xf32>
    %87 = arith.addf %50, %86 : vector<32x16xf32>
    %88 = arith.mulf %87, %7 : vector<32x16xf32>
    %89 = vector.extract_strided_slice %85 {offsets = [32, 0], sizes = [32, 16], strides = [1, 1]} : vector<64x16xf32> to vector<32x16xf32>
    %90 = arith.addf %52, %89 : vector<32x16xf32>
    %cst_50 = arith.constant 0.000000e+00 : f32
    %91 = vector.broadcast %cst_50 : f32 to vector<32x2xf32>
    %92 = tpu.concatenate %91, %88, %91 in 1 : vector<32x2xf32>, vector<32x16xf32>, vector<32x2xf32> -> vector<32x20xf32>
    %93 = vector.extract_strided_slice %92 {offsets = [0, 0], sizes = [32, 16], strides = [1, 1]} : vector<32x20xf32> to vector<32x16xf32>
    %94 = vector.extract_strided_slice %92 {offsets = [0, 1], sizes = [32, 16], strides = [1, 1]} : vector<32x20xf32> to vector<32x16xf32>
    %95 = vector.extract_strided_slice %92 {offsets = [0, 2], sizes = [32, 16], strides = [1, 1]} : vector<32x20xf32> to vector<32x16xf32>
    %96 = vector.extract_strided_slice %92 {offsets = [0, 3], sizes = [32, 16], strides = [1, 1]} : vector<32x20xf32> to vector<32x16xf32>
    %97 = vector.extract_strided_slice %92 {offsets = [0, 4], sizes = [32, 16], strides = [1, 1]} : vector<32x20xf32> to vector<32x16xf32>
    %98 = tpu.concatenate %93, %94, %95, %96, %97 in 0 : vector<32x16xf32>, vector<32x16xf32>, vector<32x16xf32>, vector<32x16xf32>, vector<32x16xf32> -> vector<160x16xf32>
    %c2 = arith.constant 2 : index
    %c0_51 = arith.constant 0 : index
    %c0_52 = arith.constant 0 : index
    %99 = vector.load %arg5[%c2, %c0_51, %c0_52] : memref<4x64x160xf32, #tpu.memory_space<vmem>>, vector<1x64x160xf32>
    %100 = vector.shape_cast %99 : vector<1x64x160xf32> to vector<64x160xf32>
    %cst_53 = arith.constant dense<0.000000e+00> : vector<64x16xf32>
    %101 = tpu.matmul %100, %98, %cst_53 {dimension_numbers = #tpu.dot_dimension_numbers<[1], [0], [0], [1], [0, 0, 1, 1], [], []>} : vector<64x160xf32>, vector<160x16xf32>, vector<64x16xf32> -> vector<64x16xf32>
    %c2_54 = arith.constant 2 : index
    %c0_55 = arith.constant 0 : index
    %c0_56 = arith.constant 0 : index
    %102 = vector.load %arg6[%c2_54, %c0_55, %c0_56] : memref<4x64x1xf32, #tpu.memory_space<vmem>>, vector<1x64x1xf32>
    %103 = vector.shape_cast %102 : vector<1x64x1xf32> to vector<64x1xf32>
    %104 = vector.broadcast %103 : vector<64x1xf32> to vector<64x16xf32>
    %105 = arith.addf %101, %104 : vector<64x16xf32>
    %106 = vector.extract_strided_slice %105 {offsets = [0, 0], sizes = [32, 16], strides = [1, 1]} : vector<64x16xf32> to vector<32x16xf32>
    %107 = math.tanh %106 : vector<32x16xf32>
    %108 = vector.extract_strided_slice %105 {offsets = [32, 0], sizes = [32, 16], strides = [1, 1]} : vector<64x16xf32> to vector<32x16xf32>
    %cst_57 = arith.constant 5.000000e-01 : f32
    %109 = vector.broadcast %cst_57 : f32 to vector<32x16xf32>
    %110 = arith.mulf %109, %108 : vector<32x16xf32>
    %111 = math.tanh %110 : vector<32x16xf32>
    %cst_58 = arith.constant 1.000000e+00 : f32
    %112 = vector.broadcast %cst_58 : f32 to vector<32x16xf32>
    %113 = arith.addf %112, %111 : vector<32x16xf32>
    %cst_59 = arith.constant 5.000000e-01 : f32
    %114 = vector.broadcast %cst_59 : f32 to vector<32x16xf32>
    %115 = arith.mulf %114, %113 : vector<32x16xf32>
    %116 = arith.mulf %107, %115 : vector<32x16xf32>
    %c2_60 = arith.constant 2 : index
    %c0_61 = arith.constant 0 : index
    %c0_62 = arith.constant 0 : index
    %117 = vector.load %arg7[%c2_60, %c0_61, %c0_62] : memref<4x64x32xf32, #tpu.memory_space<vmem>>, vector<1x64x32xf32>
    %118 = vector.shape_cast %117 : vector<1x64x32xf32> to vector<64x32xf32>
    %cst_63 = arith.constant dense<0.000000e+00> : vector<64x16xf32>
    %119 = tpu.matmul %118, %116, %cst_63 {dimension_numbers = #tpu.dot_dimension_numbers<[1], [0], [0], [1], [0, 0, 1, 1], [], []>} : vector<64x32xf32>, vector<32x16xf32>, vector<64x16xf32> -> vector<64x16xf32>
    %c2_64 = arith.constant 2 : index
    %c0_65 = arith.constant 0 : index
    %c0_66 = arith.constant 0 : index
    %120 = vector.load %arg8[%c2_64, %c0_65, %c0_66] : memref<4x64x1xf32, #tpu.memory_space<vmem>>, vector<1x64x1xf32>
    %121 = vector.shape_cast %120 : vector<1x64x1xf32> to vector<64x1xf32>
    %122 = vector.broadcast %121 : vector<64x1xf32> to vector<64x16xf32>
    %123 = arith.addf %119, %122 : vector<64x16xf32>
    %124 = vector.extract_strided_slice %123 {offsets = [0, 0], sizes = [32, 16], strides = [1, 1]} : vector<64x16xf32> to vector<32x16xf32>
    %125 = arith.addf %88, %124 : vector<32x16xf32>
    %126 = arith.mulf %125, %7 : vector<32x16xf32>
    %127 = vector.extract_strided_slice %123 {offsets = [32, 0], sizes = [32, 16], strides = [1, 1]} : vector<64x16xf32> to vector<32x16xf32>
    %128 = arith.addf %90, %127 : vector<32x16xf32>
    %cst_67 = arith.constant 0.000000e+00 : f32
    %129 = vector.broadcast %cst_67 : f32 to vector<32x2xf32>
    %130 = tpu.concatenate %129, %126, %129 in 1 : vector<32x2xf32>, vector<32x16xf32>, vector<32x2xf32> -> vector<32x20xf32>
    %131 = vector.extract_strided_slice %130 {offsets = [0, 0], sizes = [32, 16], strides = [1, 1]} : vector<32x20xf32> to vector<32x16xf32>
    %132 = vector.extract_strided_slice %130 {offsets = [0, 1], sizes = [32, 16], strides = [1, 1]} : vector<32x20xf32> to vector<32x16xf32>
    %133 = vector.extract_strided_slice %130 {offsets = [0, 2], sizes = [32, 16], strides = [1, 1]} : vector<32x20xf32> to vector<32x16xf32>
    %134 = vector.extract_strided_slice %130 {offsets = [0, 3], sizes = [32, 16], strides = [1, 1]} : vector<32x20xf32> to vector<32x16xf32>
    %135 = vector.extract_strided_slice %130 {offsets = [0, 4], sizes = [32, 16], strides = [1, 1]} : vector<32x20xf32> to vector<32x16xf32>
    %136 = tpu.concatenate %131, %132, %133, %134, %135 in 0 : vector<32x16xf32>, vector<32x16xf32>, vector<32x16xf32>, vector<32x16xf32>, vector<32x16xf32> -> vector<160x16xf32>
    %c3 = arith.constant 3 : index
    %c0_68 = arith.constant 0 : index
    %c0_69 = arith.constant 0 : index
    %137 = vector.load %arg5[%c3, %c0_68, %c0_69] : memref<4x64x160xf32, #tpu.memory_space<vmem>>, vector<1x64x160xf32>
    %138 = vector.shape_cast %137 : vector<1x64x160xf32> to vector<64x160xf32>
    %cst_70 = arith.constant dense<0.000000e+00> : vector<64x16xf32>
    %139 = tpu.matmul %138, %136, %cst_70 {dimension_numbers = #tpu.dot_dimension_numbers<[1], [0], [0], [1], [0, 0, 1, 1], [], []>} : vector<64x160xf32>, vector<160x16xf32>, vector<64x16xf32> -> vector<64x16xf32>
    %c3_71 = arith.constant 3 : index
    %c0_72 = arith.constant 0 : index
    %c0_73 = arith.constant 0 : index
    %140 = vector.load %arg6[%c3_71, %c0_72, %c0_73] : memref<4x64x1xf32, #tpu.memory_space<vmem>>, vector<1x64x1xf32>
    %141 = vector.shape_cast %140 : vector<1x64x1xf32> to vector<64x1xf32>
    %142 = vector.broadcast %141 : vector<64x1xf32> to vector<64x16xf32>
    %143 = arith.addf %139, %142 : vector<64x16xf32>
    %144 = vector.extract_strided_slice %143 {offsets = [0, 0], sizes = [32, 16], strides = [1, 1]} : vector<64x16xf32> to vector<32x16xf32>
    %145 = math.tanh %144 : vector<32x16xf32>
    %146 = vector.extract_strided_slice %143 {offsets = [32, 0], sizes = [32, 16], strides = [1, 1]} : vector<64x16xf32> to vector<32x16xf32>
    %cst_74 = arith.constant 5.000000e-01 : f32
    %147 = vector.broadcast %cst_74 : f32 to vector<32x16xf32>
    %148 = arith.mulf %147, %146 : vector<32x16xf32>
    %149 = math.tanh %148 : vector<32x16xf32>
    %cst_75 = arith.constant 1.000000e+00 : f32
    %150 = vector.broadcast %cst_75 : f32 to vector<32x16xf32>
    %151 = arith.addf %150, %149 : vector<32x16xf32>
    %cst_76 = arith.constant 5.000000e-01 : f32
    %152 = vector.broadcast %cst_76 : f32 to vector<32x16xf32>
    %153 = arith.mulf %152, %151 : vector<32x16xf32>
    %154 = arith.mulf %145, %153 : vector<32x16xf32>
    %c3_77 = arith.constant 3 : index
    %c0_78 = arith.constant 0 : index
    %c0_79 = arith.constant 0 : index
    %155 = vector.load %arg7[%c3_77, %c0_78, %c0_79] : memref<4x64x32xf32, #tpu.memory_space<vmem>>, vector<1x64x32xf32>
    %156 = vector.shape_cast %155 : vector<1x64x32xf32> to vector<64x32xf32>
    %cst_80 = arith.constant dense<0.000000e+00> : vector<64x16xf32>
    %157 = tpu.matmul %156, %154, %cst_80 {dimension_numbers = #tpu.dot_dimension_numbers<[1], [0], [0], [1], [0, 0, 1, 1], [], []>} : vector<64x32xf32>, vector<32x16xf32>, vector<64x16xf32> -> vector<64x16xf32>
    %c3_81 = arith.constant 3 : index
    %c0_82 = arith.constant 0 : index
    %c0_83 = arith.constant 0 : index
    %158 = vector.load %arg8[%c3_81, %c0_82, %c0_83] : memref<4x64x1xf32, #tpu.memory_space<vmem>>, vector<1x64x1xf32>
    %159 = vector.shape_cast %158 : vector<1x64x1xf32> to vector<64x1xf32>
    %160 = vector.broadcast %159 : vector<64x1xf32> to vector<64x16xf32>
    %161 = arith.addf %157, %160 : vector<64x16xf32>
    %162 = vector.extract_strided_slice %161 {offsets = [0, 0], sizes = [32, 16], strides = [1, 1]} : vector<64x16xf32> to vector<32x16xf32>
    %163 = arith.addf %128, %162 : vector<32x16xf32>
    %164 = arith.mulf %163, %7 : vector<32x16xf32>
    %c0_84 = arith.constant 0 : index
    %c0_85 = arith.constant 0 : index
    %165 = vector.load %arg9[%c0_84, %c0_85] : memref<4x32xf32, #tpu.memory_space<vmem>>, vector<4x32xf32>
    %cst_86 = arith.constant dense<0.000000e+00> : vector<4x16xf32>
    %166 = tpu.matmul %165, %164, %cst_86 {dimension_numbers = #tpu.dot_dimension_numbers<[1], [0], [0], [1], [0, 0, 1, 1], [], []>} : vector<4x32xf32>, vector<32x16xf32>, vector<4x16xf32> -> vector<4x16xf32>
    %c0_87 = arith.constant 0 : index
    %c0_88 = arith.constant 0 : index
    %167 = vector.load %arg10[%c0_87, %c0_88] : memref<4x1xf32, #tpu.memory_space<vmem>>, vector<4x1xf32>
    %168 = vector.broadcast %167 : vector<4x1xf32> to vector<4x16xf32>
    %169 = arith.addf %166, %168 : vector<4x16xf32>
    %170 = vector.broadcast %5 : vector<1x16xf32> to vector<4x16xf32>
    %171 = arith.mulf %169, %170 : vector<4x16xf32>
    %172 = vector.broadcast %5 : vector<1x16xf32> to vector<4x16xf32>
    %173 = arith.mulf %3, %172 : vector<4x16xf32>
    %174 = arith.addf %171, %173 : vector<4x16xf32>
    %c0_89 = arith.constant 0 : index
    %c0_90 = arith.constant 0 : index
    %c0_91 = arith.constant 0 : index
    %c0_92 = arith.constant 0 : index
    %175 = vector.load %arg11[%c0_89, %c0_90, %c0_91, %c0_92] : memref<1x1x4x16xf32, #tpu.memory_space<vmem>>, vector<1x1x4x16xf32>
    %176 = vector.shape_cast %175 : vector<1x1x4x16xf32> to vector<4x16xf32>
    %177 = vector.shape_cast %174 : vector<4x16xf32> to vector<1x1x4x16xf32>
    tpu.vector_store %arg11[%c0_89, %c0_90, %c0_91, %c0_92], %177 {strides = array<i32>} : memref<1x1x4x16xf32, #tpu.memory_space<vmem>>, vector<1x1x4x16xf32>,
    return
  }
  func.func @transform_0(%arg0: i32) -> (i32, i32, i32, i32) {
    %c0_i32 = arith.constant 0 : i32
    %c0_i32_0 = arith.constant 0 : i32
    %c0_i32_1 = arith.constant 0 : i32
    %c0_i32_2 = arith.constant 0 : i32
    return %arg0, %c0_i32, %c0_i32_0, %c0_i32_1 : i32, i32, i32, i32
  }
  func.func @transform_1(%arg0: i32) -> (i32, i32, i32) {
    %c0_i32 = arith.constant 0 : i32
    %c0_i32_0 = arith.constant 0 : i32
    %c0_i32_1 = arith.constant 0 : i32
    return %arg0, %c0_i32, %c0_i32_0 : i32, i32, i32
  }
  func.func @transform_2(%arg0: i32) -> (i32, i32) {
    %c0_i32 = arith.constant 0 : i32
    %c0_i32_0 = arith.constant 0 : i32
    %c0_i32_1 = arith.constant 0 : i32
    return %c0_i32, %c0_i32_0 : i32, i32
  }
  func.func @transform_3(%arg0: i32) -> (i32, i32) {
    %c0_i32 = arith.constant 0 : i32
    %c0_i32_0 = arith.constant 0 : i32
    %c0_i32_1 = arith.constant 0 : i32
    return %c0_i32, %c0_i32_0 : i32, i32
  }
  func.func @transform_4(%arg0: i32) -> (i32, i32, i32) {
    %c0_i32 = arith.constant 0 : i32
    %c0_i32_0 = arith.constant 0 : i32
    %c0_i32_1 = arith.constant 0 : i32
    %c0_i32_2 = arith.constant 0 : i32
    return %c0_i32, %c0_i32_0, %c0_i32_1 : i32, i32, i32
  }
  func.func @transform_5(%arg0: i32) -> (i32, i32, i32) {
    %c0_i32 = arith.constant 0 : i32
    %c0_i32_0 = arith.constant 0 : i32
    %c0_i32_1 = arith.constant 0 : i32
    %c0_i32_2 = arith.constant 0 : i32
    return %c0_i32, %c0_i32_0, %c0_i32_1 : i32, i32, i32
  }
  func.func @transform_6(%arg0: i32) -> (i32, i32, i32) {
    %c0_i32 = arith.constant 0 : i32
    %c0_i32_0 = arith.constant 0 : i32
    %c0_i32_1 = arith.constant 0 : i32
    %c0_i32_2 = arith.constant 0 : i32
    return %c0_i32, %c0_i32_0, %c0_i32_1 : i32, i32, i32
  }
  func.func @transform_7(%arg0: i32) -> (i32, i32, i32) {
    %c0_i32 = arith.constant 0 : i32
    %c0_i32_0 = arith.constant 0 : i32
    %c0_i32_1 = arith.constant 0 : i32
    %c0_i32_2 = arith.constant 0 : i32
    return %c0_i32, %c0_i32_0, %c0_i32_1 : i32, i32, i32
  }
  func.func @transform_8(%arg0: i32) -> (i32, i32) {
    %c0_i32 = arith.constant 0 : i32
    %c0_i32_0 = arith.constant 0 : i32
    %c0_i32_1 = arith.constant 0 : i32
    return %c0_i32, %c0_i32_0 : i32, i32
  }
  func.func @transform_9(%arg0: i32) -> (i32, i32) {
    %c0_i32 = arith.constant 0 : i32
    %c0_i32_0 = arith.constant 0 : i32
    %c0_i32_1 = arith.constant 0 : i32
    return %c0_i32, %c0_i32_0 : i32, i32
  }
  func.func @transform_10(%arg0: i32) -> (i32, i32, i32, i32) {
    %c1_i32 = arith.constant 1 : i32
    %c0_i32 = arith.constant 0 : i32
    %c0_i32_0 = arith.constant 0 : i32
    %c0_i32_1 = arith.constant 0 : i32
    return %arg0, %c1_i32, %c0_i32, %c0_i32_0 : i32, i32, i32, i32
  }
}

</mosaic_0001>

<llo_original>
// kernel: tpu_custom_call.1
$region0: #{tpu_custom_call.1}
  #allocation0 [shape = 'u32[]', space=smem, size = 0x4, offset = 0x4, fixed_abs, tag = 'smem constant byte address 0x4 - core index']
  #allocation1 [shape = 'u32[144,128]{1,0:T(1,128)}', space=vmem, size = 0x12000, scoped, tag = 'internal scratch']
  %s0 = inlined_call_operand.hbm [shape: f32[2,2,4,16], index: 0, kind: input, shape index: {}, may-alias: {0,10}]
  %s1 = inlined_call_operand.vmem [shape: f32[2,1,16], index: 1, kind: input, shape index: {}]
  %s2 = inlined_call_operand.vmem [shape: f32[32,4], index: 2, kind: input, shape index: {}]
  %s3 = inlined_call_operand.vmem [shape: f32[32,1], index: 3, kind: input, shape index: {}]
  %s4 = inlined_call_operand.vmem [shape: f32[4,64,160], index: 4, kind: input, shape index: {}]
  %s5 = inlined_call_operand.vmem [shape: f32[4,64,1], index: 5, kind: input, shape index: {}]
  %s6 = inlined_call_operand.vmem [shape: f32[4,64,32], index: 6, kind: input, shape index: {}]
  %s7 = inlined_call_operand.vmem [shape: f32[4,64,1], index: 7, kind: input, shape index: {}]
  %s8 = inlined_call_operand.vmem [shape: f32[4,32], index: 8, kind: input, shape index: {}]
  %s9 = inlined_call_operand.vmem [shape: f32[4,1], index: 9, kind: input, shape index: {}]
  %s10 = inlined_call_operand.hbm [shape: f32[2,2,4,16], index: 10, kind: output, shape index: {}, may-alias: {0,10}]
  %s11 = sld [smem:[#allocation0]]
  $region77: #{tpu_custom_call.1} parent=0
    _
  %s13 = ssub.s32 1, %s11
  %s14 = scalar_select 0, %s13, %s11
  $region1: #{tpu_custom_call.1} parent=0
    #allocation2 [shape = 'u8[8192]{0}', space=vmem, size = 0x2000, scoped, tag = 'input window, operand 0']
    #allocation3 [shape = 's32[2]{0}', space=sflag, size = 0x8, scoped, tag = 'scoped memory for tpu_custom_call.1']
    #allocation4 [shape = 's32[2]{0}', space=sflag, size = 0x8, scoped, tag = 'scoped memory for tpu_custom_call.1']
    #allocation5 [shape = 'u8[4096]{0}', space=vmem, size = 0x1000, scoped, tag = 'output window, operand 0']
    %15 = vsyncpa [#allocation3], 0
    %s16 = scalar_lea.sflag [#allocation3], 1
    %17 = vsyncpa %s16, 0
    %18 = vsyncpa [#allocation4], 0
    %s19 = scalar_lea.sflag [#allocation4], 1
    %20 = vsyncpa %s19, 0
    loop: start=0, step=1, limit=4
    $region2: #{tpu_custom_call.1} parent=1 // loop_pre_header
      _
    $region3: #{tpu_custom_call.1} parent=1 // loop_header
      %s22 = sphi 0, %s26
      %p23 = scmp.ge.s32.totalorder %s22, 4
      %s32 = sphi 0, %s34
      %s35 = sphi 0, %s32
      %s36 = sphi 0, %s35
      %s52 = sphi 0, %s36
      %s58 = sphi 0, %s60
      %s61 = sphi 0, %s58
      %s62 = sphi 0, %s61
      %s78 = sphi 0, %s62
      %s82 = sphi 0, %s82
      %s84 = sphi 0, %s82
      %s85 = sphi 0, %s84
      %s99 = sphi 0, %s85
      %s103 = sphi 0, %s103
      %s105 = sphi 0, %s103
      %s106 = sphi 0, %s105
      %s120 = sphi 0, %s106
      %s124 = sphi 0, %s124
      %s126 = sphi 0, %s124
      %s127 = sphi 0, %s126
      %s141 = sphi 0, %s127
      %s145 = sphi 0, %s145
      %s147 = sphi 0, %s145
      %s148 = sphi 0, %s147
      %s162 = sphi 0, %s148
      %s166 = sphi 0, %s166
      %s168 = sphi 0, %s166
      %s169 = sphi 0, %s168
      %s183 = sphi 0, %s169
      %s187 = sphi 0, %s187
      %s189 = sphi 0, %s187
      %s190 = sphi 0, %s189
      %s204 = sphi 0, %s190
      %s208 = sphi 0, %s208
      %s210 = sphi 0, %s208
      %s211 = sphi 0, %s210
      %s225 = sphi 0, %s211
      %s229 = sphi 0, %s229
      %s231 = sphi 0, %s229
      %s232 = sphi 0, %s231
      %s246 = sphi 0, %s232
      %s252 = sphi 0, %s254
      %s255 = sphi 0, %s252
      %s256 = sphi 0, %s255
      %s272 = sphi 0, %s256
    $region4: #{tpu_custom_call.1} parent=1 // loop_header_branch
      %25 = sbr.rel (%p23) target = $region8
    $region5: #{tpu_custom_call.1} parent=1 // loop_body
      %s27 = ssub.s32 %s22, 1
      %s28 = ssub.s32 %s22, 2
      %s29 = sadd.s32 %s22, 1
      %s30 = ssub.s32 %s22, %s29
      %p31 = scmp.eq.s32.totalorder %s30, 0
      %s33 = sadd.s32 %s32, 1
      %s34 = scalar_select %p31, %s32, %s33
      %p37 = pneg %p31
      %p38 = scmp.eq.s32.totalorder %s22, 1
      %p39 = por %p37, %p38
      %p40 = scmp.ne.s32.totalorder %s32, %s35
      %p41 = scmp.eq.s32.totalorder %s22, 0
      %p42 = por %p40, %p41
      %p43 = scmp.ne.s32.totalorder %s32, %s35
      %p44 = scmp.eq.s32.totalorder %s27, 1
      %p45 = por %p43, %p44
      %p46 = scmp.ne.s32.totalorder %s35, %s36
      %p47 = scmp.eq.s32.totalorder %s27, 0
      %p48 = por %p46, %p47
      %p49 = scmp.ne.s32.totalorder %s35, %s36
      %p50 = scmp.eq.s32.totalorder %s28, 1
      %p51 = por %p49, %p50
      %p53 = scmp.ne.s32.totalorder %s36, %s52
      %p54 = scmp.eq.s32.totalorder %s28, 0
      %p55 = por %p53, %p54
      %s56 = ssub.s32 %s22, %s29
      %p57 = scmp.eq.s32.totalorder %s56, 0
      %s59 = sadd.s32 %s58, 1
      %s60 = scalar_select %p57, %s58, %s59
      %p63 = pneg %p57
      %p64 = scmp.eq.s32.totalorder %s22, 1
      %p65 = por %p63, %p64
      %p66 = scmp.ne.s32.totalorder %s58, %s61
      %p67 = scmp.eq.s32.totalorder %s22, 0
      %p68 = por %p66, %p67
      %p69 = scmp.ne.s32.totalorder %s58, %s61
      %p70 = scmp.eq.s32.totalorder %s27, 1
      %p71 = por %p69, %p70
      %p72 = scmp.ne.s32.totalorder %s61, %s62
      %p73 = scmp.eq.s32.totalorder %s27, 0
      %p74 = por %p72, %p73
      %p75 = scmp.ne.s32.totalorder %s61, %s62
      %p76 = scmp.eq.s32.totalorder %s28, 1
      %p77 = por %p75, %p76
      %p79 = scmp.ne.s32.totalorder %s62, %s78
      %p80 = scmp.eq.s32.totalorder %s28, 0
      %p81 = por %p79, %p80
      %s83 = sadd.s32 %s82, 1
      %p86 = scmp.eq.s32.totalorder %s22, 1
      %p87 = scmp.ne.s32.totalorder %s82, %s84
      %p88 = scmp.eq.s32.totalorder %s22, 0
      %p89 = por %p87, %p88
      %p90 = scmp.ne.s32.totalorder %s82, %s84
      %p91 = scmp.eq.s32.totalorder %s27, 1
      %p92 = por %p90, %p91
      %p93 = scmp.ne.s32.totalorder %s84, %s85
      %p94 = scmp.eq.s32.totalorder %s27, 0
      %p95 = por %p93, %p94
      %p96 = scmp.ne.s32.totalorder %s84, %s85
      %p97 = scmp.eq.s32.totalorder %s28, 1
      %p98 = por %p96, %p97
      %p100 = scmp.ne.s32.totalorder %s85, %s99
      %p101 = scmp.eq.s32.totalorder %s28, 0
      %p102 = por %p100, %p101
      %s104 = sadd.s32 %s103, 1
      %p107 = scmp.eq.s32.totalorder %s22, 1
      %p108 = scmp.ne.s32.totalorder %s103, %s105
      %p109 = scmp.eq.s32.totalorder %s22, 0
      %p110 = por %p108, %p109
      %p111 = scmp.ne.s32.totalorder %s103, %s105
      %p112 = scmp.eq.s32.totalorder %s27, 1
      %p113 = por %p111, %p112
      %p114 = scmp.ne.s32.totalorder %s105, %s106
      %p115 = scmp.eq.s32.totalorder %s27, 0
      %p116 = por %p114, %p115
      %p117 = scmp.ne.s32.totalorder %s105, %s106
      %p118 = scmp.eq.s32.totalorder %s28, 1
      %p119 = por %p117, %p118
      %p121 = scmp.ne.s32.totalorder %s106, %s120
      %p122 = scmp.eq.s32.totalorder %s28, 0
      %p123 = por %p121, %p122
      %s125 = sadd.s32 %s124, 1
      %p128 = scmp.eq.s32.totalorder %s22, 1
      %p129 = scmp.ne.s32.totalorder %s124, %s126
      %p130 = scmp.eq.s32.totalorder %s22, 0
      %p131 = por %p129, %p130
      %p132 = scmp.ne.s32.totalorder %s124, %s126
      %p133 = scmp.eq.s32.totalorder %s27, 1
      %p134 = por %p132, %p133
      %p135 = scmp.ne.s32.totalorder %s126, %s127
      %p136 = scmp.eq.s32.totalorder %s27, 0
      %p137 = por %p135, %p136
      %p138 = scmp.ne.s32.totalorder %s126, %s127
      %p139 = scmp.eq.s32.totalorder %s28, 1
      %p140 = por %p138, %p139
      %p142 = scmp.ne.s32.totalorder %s127, %s141
      %p143 = scmp.eq.s32.totalorder %s28, 0
      %p144 = por %p142, %p143
      %s146 = sadd.s32 %s145, 1
      %p149 = scmp.eq.s32.totalorder %s22, 1
      %p150 = scmp.ne.s32.totalorder %s145, %s147
      %p151 = scmp.eq.s32.totalorder %s22, 0
      %p152 = por %p150, %p151
      %p153 = scmp.ne.s32.totalorder %s145, %s147
      %p154 = scmp.eq.s32.totalorder %s27, 1
      %p155 = por %p153, %p154
      %p156 = scmp.ne.s32.totalorder %s147, %s148
      %p157 = scmp.eq.s32.totalorder %s27, 0
      %p158 = por %p156, %p157
      %p159 = scmp.ne.s32.totalorder %s147, %s148
      %p160 = scmp.eq.s32.totalorder %s28, 1
      %p161 = por %p159, %p160
      %p163 = scmp.ne.s32.totalorder %s148, %s162
      %p164 = scmp.eq.s32.totalorder %s28, 0
      %p165 = por %p163, %p164
      %s167 = sadd.s32 %s166, 1
      %p170 = scmp.eq.s32.totalorder %s22, 1
      %p171 = scmp.ne.s32.totalorder %s166, %s168
      %p172 = scmp.eq.s32.totalorder %s22, 0
      %p173 = por %p171, %p172
      %p174 = scmp.ne.s32.totalorder %s166, %s168
      %p175 = scmp.eq.s32.totalorder %s27, 1
      %p176 = por %p174, %p175
      %p177 = scmp.ne.s32.totalorder %s168, %s169
      %p178 = scmp.eq.s32.totalorder %s27, 0
      %p179 = por %p177, %p178
      %p180 = scmp.ne.s32.totalorder %s168, %s169
      %p181 = scmp.eq.s32.totalorder %s28, 1
      %p182 = por %p180, %p181
      %p184 = scmp.ne.s32.totalorder %s169, %s183
      %p185 = scmp.eq.s32.totalorder %s28, 0
      %p186 = por %p184, %p185
      %s188 = sadd.s32 %s187, 1
      %p191 = scmp.eq.s32.totalorder %s22, 1
      %p192 = scmp.ne.s32.totalorder %s187, %s189
      %p193 = scmp.eq.s32.totalorder %s22, 0
      %p194 = por %p192, %p193
      %p195 = scmp.ne.s32.totalorder %s187, %s189
      %p196 = scmp.eq.s32.totalorder %s27, 1
      %p197 = por %p195, %p196
      %p198 = scmp.ne.s32.totalorder %s189, %s190
      %p199 = scmp.eq.s32.totalorder %s27, 0
      %p200 = por %p198, %p199
      %p201 = scmp.ne.s32.totalorder %s189, %s190
      %p202 = scmp.eq.s32.totalorder %s28, 1
      %p203 = por %p201, %p202
      %p205 = scmp.ne.s32.totalorder %s190, %s204
      %p206 = scmp.eq.s32.totalorder %s28, 0
      %p207 = por %p205, %p206
      %s209 = sadd.s32 %s208, 1
      %p212 = scmp.eq.s32.totalorder %s22, 1
      %p213 = scmp.ne.s32.totalorder %s208, %s210
      %p214 = scmp.eq.s32.totalorder %s22, 0
      %p215 = por %p213, %p214
      %p216 = scmp.ne.s32.totalorder %s208, %s210
      %p217 = scmp.eq.s32.totalorder %s27, 1
      %p218 = por %p216, %p217
      %p219 = scmp.ne.s32.totalorder %s210, %s211
      %p220 = scmp.eq.s32.totalorder %s27, 0
      %p221 = por %p219, %p220
      %p222 = scmp.ne.s32.totalorder %s210, %s211
      %p223 = scmp.eq.s32.totalorder %s28, 1
      %p224 = por %p222, %p223
      %p226 = scmp.ne.s32.totalorder %s211, %s225
      %p227 = scmp.eq.s32.totalorder %s28, 0
      %p228 = por %p226, %p227
      %s230 = sadd.s32 %s229, 1
      %p233 = scmp.eq.s32.totalorder %s22, 1
      %p234 = scmp.ne.s32.totalorder %s229, %s231
      %p235 = scmp.eq.s32.totalorder %s22, 0
      %p236 = por %p234, %p235
      %p237 = scmp.ne.s32.totalorder %s229, %s231
      %p238 = scmp.eq.s32.totalorder %s27, 1
      %p239 = por %p237, %p238
      %p240 = scmp.ne.s32.totalorder %s231, %s232
      %p241 = scmp.eq.s32.totalorder %s27, 0
      %p242 = por %p240, %p241
      %p243 = scmp.ne.s32.totalorder %s231, %s232
      %p244 = scmp.eq.s32.totalorder %s28, 1
      %p245 = por %p243, %p244
      %p247 = scmp.ne.s32.totalorder %s232, %s246
      %p248 = scmp.eq.s32.totalorder %s28, 0
      %p249 = por %p247, %p248
      %s250 = ssub.s32 %s22, %s29
      %p251 = scmp.eq.s32.totalorder %s250, 0
      %s253 = sadd.s32 %s252, 1
      %s254 = scalar_select %p251, %s252, %s253
      %p257 = pneg %p251
      %p258 = scmp.eq.s32.totalorder %s22, 1
      %p259 = por %p257, %p258
      %p260 = scmp.ne.s32.totalorder %s252, %s255
      %p261 = scmp.eq.s32.totalorder %s22, 0
      %p262 = por %p260, %p261
      %p263 = scmp.ne.s32.totalorder %s252, %s255
      %p264 = scmp.eq.s32.totalorder %s27, 1
      %p265 = por %p263, %p264
      %p266 = scmp.ne.s32.totalorder %s255, %s256
      %p267 = scmp.eq.s32.totalorder %s27, 0
      %p268 = por %p266, %p267
      %p269 = scmp.ne.s32.totalorder %s255, %s256
      %p270 = scmp.eq.s32.totalorder %s28, 1
      %p271 = por %p269, %p270
      %p273 = scmp.ne.s32.totalorder %s256, %s272
      %p274 = scmp.eq.s32.totalorder %s28, 0
      %p275 = por %p273, %p274
      %p276 = scmp.le.s32.totalorder 1, %s22
      %p277 = scmp.lt.s32.totalorder %s22, 3
      %p278 = pnand %p276, %p277
      %p279 = pneg %p278
      // Predicated region
      $region9: #{tpu_custom_call.1} parent=5 // pred_check
        _
      $region10: #{tpu_custom_call.1} parent=5 // pred_check_branch
        %281 = sbr.rel (%p278) target = $region12
      $region11: #{tpu_custom_call.1} parent=5 // pred_region
        %s282 = ssub.s32 %s22, 1
        // Predicated region
        $region13: #{tpu_custom_call.1} parent=11 // pred_check
          %p283 = pneg %p95
        $region14: #{tpu_custom_call.1} parent=11 // pred_check_branch
          %285 = sbr.rel (%p283) target = $region16
        $region15: #{tpu_custom_call.1} parent=11 // pred_region
          _
        $region16: #{tpu_custom_call.1} parent=11 // pred_fallthru
          _
        // Predicated region
        $region17: #{tpu_custom_call.1} parent=11 // pred_check
          %p286 = pneg %p116
        $region18: #{tpu_custom_call.1} parent=11 // pred_check_branch
          %288 = sbr.rel (%p286) target = $region20
        $region19: #{tpu_custom_call.1} parent=11 // pred_region
          _
        $region20: #{tpu_custom_call.1} parent=11 // pred_fallthru
          _
        // Predicated region
        $region21: #{tpu_custom_call.1} parent=11 // pred_check
          %p289 = pneg %p137
        $region22: #{tpu_custom_call.1} parent=11 // pred_check_branch
          %291 = sbr.rel (%p289) target = $region24
        $region23: #{tpu_custom_call.1} parent=11 // pred_region
          _
        $region24: #{tpu_custom_call.1} parent=11 // pred_fallthru
          _
        // Predicated region
        $region25: #{tpu_custom_call.1} parent=11 // pred_check
          %p292 = pneg %p158
        $region26: #{tpu_custom_call.1} parent=11 // pred_check_branch
          %294 = sbr.rel (%p292) target = $region28
        $region27: #{tpu_custom_call.1} parent=11 // pred_region
          _
        $region28: #{tpu_custom_call.1} parent=11 // pred_fallthru
          _
        // Predicated region
        $region29: #{tpu_custom_call.1} parent=11 // pred_check
          %p295 = pneg %p179
        $region30: #{tpu_custom_call.1} parent=11 // pred_check_branch
          %297 = sbr.rel (%p295) target = $region32
        $region31: #{tpu_custom_call.1} parent=11 // pred_region
          _
        $region32: #{tpu_custom_call.1} parent=11 // pred_fallthru
          _
        // Predicated region
        $region33: #{tpu_custom_call.1} parent=11 // pred_check
          %p298 = pneg %p200
        $region34: #{tpu_custom_call.1} parent=11 // pred_check_branch
          %300 = sbr.rel (%p298) target = $region36
        $region35: #{tpu_custom_call.1} parent=11 // pred_region
          _
        $region36: #{tpu_custom_call.1} parent=11 // pred_fallthru
          _
        // Predicated region
        $region37: #{tpu_custom_call.1} parent=11 // pred_check
          %p301 = pneg %p221
        $region38: #{tpu_custom_call.1} parent=11 // pred_check_branch
          %303 = sbr.rel (%p301) target = $region40
        $region39: #{tpu_custom_call.1} parent=11 // pred_region
          _
        $region40: #{tpu_custom_call.1} parent=11 // pred_fallthru
          _
        // Predicated region
        $region41: #{tpu_custom_call.1} parent=11 // pred_check
          %p304 = pneg %p242
        $region42: #{tpu_custom_call.1} parent=11 // pred_check_branch
          %306 = sbr.rel (%p304) target = $region44
        $region43: #{tpu_custom_call.1} parent=11 // pred_region
          _
        $region44: #{tpu_custom_call.1} parent=11 // pred_fallthru
          _
      $region12: #{tpu_custom_call.1} parent=5 // pred_fallthru
        _
      %p307 = scmp.lt.s32.totalorder %s22, 2
      // Predicated region
      $region45: #{tpu_custom_call.1} parent=5 // pred_check
        %p308 = pneg %p307
      $region46: #{tpu_custom_call.1} parent=5 // pred_check_branch
        %310 = sbr.rel (%p308) target = $region48
      $region47: #{tpu_custom_call.1} parent=5 // pred_region
        // Predicated region
        $region49: #{tpu_custom_call.1} parent=47 // pred_check
          %p311 = pneg %p42
        $region50: #{tpu_custom_call.1} parent=47 // pred_check_branch
          %313 = sbr.rel (%p311) target = $region52
        $region51: #{tpu_custom_call.1} parent=47 // pred_region
          %s314 = sand.u32 %s32, 1
          %s315 = scalar_lea.sflag [#allocation3], %s314
          %s316 = sand.u32 %s32, 1
          %s317 = smul.addr %s316, 8
          %s318 = scalar_lea.vmem [#allocation2], %s317
          %s320 = ssub.s32 128, 128
          %321 = vsyncadd %s315, %s320
          %s322 = smul.addr %s22, 2
          %s323 = smul.addr %s322, 64
          %s324 = scalar_lea.hbm %s0, %s323
          %s325 = sshll.u32 %s318, 4
          %s326 = int_to_ptr.vmem [resolvable:$true] %s325
          %331 = dma.hbm_to_vmem [thread:$0]  %s324, 128, %s326, %s315, 64, 64, 4
        $region52: #{tpu_custom_call.1} parent=47 // pred_fallthru
          _
        // Predicated region
        $region53: #{tpu_custom_call.1} parent=47 // pred_check
          %p332 = pneg %p68
        $region54: #{tpu_custom_call.1} parent=47 // pred_check_branch
          %334 = sbr.rel (%p332) target = $region56
        $region55: #{tpu_custom_call.1} parent=47 // pred_region
          %p335 = scmp.lt.s32.totalorder %s22, 1
          %s336 = scalar_select %p335, %s22, 1
          %s337 = scalar_lea.vmem %s1, %s336
        $region56: #{tpu_custom_call.1} parent=47 // pred_fallthru
          _
      $region48: #{tpu_custom_call.1} parent=5 // pred_fallthru
        _
      %p338 = scmp.le.s32.totalorder 1, %s22
      %p339 = scmp.lt.s32.totalorder %s22, 3
      %p340 = pnand %p338, %p339
      %p341 = pneg %p340
      // Predicated region
      $region57: #{tpu_custom_call.1} parent=5 // pred_check
        _
      $region58: #{tpu_custom_call.1} parent=5 // pred_check_branch
        %343 = sbr.rel (%p340) target = $region60
      $region59: #{tpu_custom_call.1} parent=5 // pred_region
        %s344 = ssub.s32 %s22, 1
        %s345 = sand.u32 %s35, 1
        %s346 = scalar_lea.sflag [#allocation3], %s345
        %s347 = sand.u32 %s35, 1
        %s348 = smul.addr %s347, 8
        %s349 = scalar_lea.vmem [#allocation2], %s348
        // Predicated region
        $region61: #{tpu_custom_call.1} parent=59 // pred_check
          %p350 = pneg %p48
        $region62: #{tpu_custom_call.1} parent=59 // pred_check_branch
          %352 = sbr.rel (%p350) target = $region64
        $region63: #{tpu_custom_call.1} parent=59 // pred_region
          %353 = dma.done %s346, 128
        $region64: #{tpu_custom_call.1} parent=59 // pred_fallthru
          _
        %s354 = sand.u32 %s35, 1
        %s355 = scalar_lea.sflag [#allocation3], %s354
        %s356 = sand.u32 %s35, 1
        %s357 = smul.addr %s356, 8
        %s358 = scalar_lea.vmem [#allocation2], %s357
        %p359 = pneg %p48
        %p360 = pneg %p45
        %p361 = scmp.lt.s32.totalorder %s27, 1
        %s362 = scalar_select %p361, %s27, 1
        %s363 = scalar_lea.vmem %s1, %s362
        %p364 = pneg %p74
        %p365 = pneg %p71
        %p366 = pneg %p95
        %p367 = pneg %p92
        %p368 = pneg %p116
        %p369 = pneg %p113
        %p370 = pneg %p137
        %p371 = pneg %p134
        %p372 = pneg %p158
        %p373 = pneg %p155
        %p374 = pneg %p179
        %p375 = pneg %p176
        %p376 = pneg %p200
        %p377 = pneg %p197
        %p378 = pneg %p221
        %p379 = pneg %p218
        %p380 = pneg %p242
        %p381 = pneg %p239
        %p382 = pneg %p268
        %p383 = pneg %p265
        %s384 = sand.u32 %s255, 1
        %s385 = scalar_lea.sflag [#allocation4], %s384
        %s386 = sand.u32 %s255, 1
        %s387 = smul.addr %s386, 4
        %s388 = scalar_lea.vmem [#allocation5], %s387
        %p389 = scmp.lt.s32.totalorder %s27, 1
        %s390 = scalar_select %p389, %s27, 1
        %s391 = scalar_lea.vmem %s1, %s390
        %v392 = vld [vmem:[%s349] sm:$0xf]
        %s393 = scalar_lea.vmem %s349, 4 [#allocation2]
        %v394 = vld [vmem:[%s393] sm:$0xf]
        %v395 = vld [vmem:[%s391] sm:$0x1]
        %v397 = vlaneseq
        %v398 = vshrl.u32 %v397, 7
        %v399 = vsub.s32 0, %v398
        %v400 = vrot.slane %v395, %v399
        %v402 = vld [vmem:[%s2] sm:$0xff]
        %v403 = vld [vmem:[%s2 + $0x8] sm:$0xff]
        %v404 = vld [vmem:[%s2 + $0x10] sm:$0xff]
        %v405 = vld [vmem:[%s2 + $0x18] sm:$0xff]
        %v406 = vld [vmem:[%s3] sm:$0xff]
        %v407 = vld [vmem:[%s3 + $0x8] sm:$0xff]
        %v408 = vld [vmem:[%s3 + $0x10] sm:$0xff]
        %v409 = vld [vmem:[%s3 + $0x18] sm:$0xff]
        %411 = vset.pattern.permute.xlu0 0
        %412 = vperm.xlu0 %411, %v406
        %v413 = vpop.permute.xlu0 %412
        %416 = vset.pattern.permute.xlu0 0
        %417 = vperm.xlu0 %416, %v407
        %v418 = vpop.permute.xlu0 %417
        %421 = vset.pattern.permute.xlu0 0
        %422 = vperm.xlu0 %421, %v408
        %v423 = vpop.permute.xlu0 %422
        %426 = vset.pattern.permute.xlu0 0
        %427 = vperm.xlu0 %426, %v409
        %v428 = vpop.permute.xlu0 %427
        %vm430 = vcmask 31744
        %v432 = vsel %vm430, %v402, 0
        %v435 = vsel %vm430, %v403, 0
        %v438 = vsel %vm430, %v404, 0
        %v441 = vsel %vm430, %v405, 0
        %vm443 = vcmask 1043456
        %v445 = vsel %vm443, %v392, 0
        %447 = vmatprep.subr.mxu0 0.0
        %448 = vmatpush1.msra.mxu0 0.0
        %449 = vmatprep.subr.mxu0 0.0
        %450 = vmatpush1.msra.mxu0 0.0
        %451 = vmatprep.subr.mxu0 0.0
        %452 = vmatpush1.msra.mxu0 0.0
        %453 = vmatprep.subr.mxu0 0.0
        %454 = vmatpush1.msra.mxu0 0.0
        %455 = vmatprep.subr.mxu0 0.0
        %456 = vmatpush1.msra.mxu0 0.0
        %457 = vmatprep.subr.mxu0 0.0
        %458 = vmatpush1.msra.mxu0 0.0
        %459 = vmatprep.subr.mxu0 0.0
        %460 = vmatpush1.msra.mxu0 0.0
        %461 = vmatprep.subr.mxu0 0.0
        %462 = vmatpush1.msra.mxu0 0.0
        %463 = vmatprep.subr.mxu0 0.0
        %464 = vmatpush1.msra.mxu0 0.0
        %465 = vmatprep.subr.mxu0 0.0
        %466 = vmatpush1.msra.mxu0 0.0
        %467 = vmatprep.subr.mxu0 0.0
        %468 = vmatpush1.msra.mxu0 0.0
        %469 = vmatprep.subr.mxu0 0.0
        %470 = vmatpush1.msra.mxu0 0.0
        %471 = vmatprep.subr.mxu0 0.0
        %472 = vmatpush1.msra.mxu0 0.0
        %473 = vmatprep.subr.mxu0 0.0
        %474 = vmatpush1.msra.mxu0 0.0
        %475 = vmatprep.subr.mxu0 0.0
        %476 = vmatpush1.msra.mxu0 0.0
        %477 = vmatprep.subr.mxu0 0.0
        %478 = vmatpush1.msra.mxu0 %v445
        %479 = vmatprep.subr.mxu0 0.0
        %480 = vmatpush2.msra.mxu0 0.0
        %481 = vmatprep.subr.mxu0 0.0
        %482 = vmatpush2.msra.mxu0 0.0
        %483 = vmatprep.subr.mxu0 0.0
        %484 = vmatpush2.msra.mxu0 0.0
        %485 = vmatprep.subr.mxu0 0.0
        %486 = vmatpush2.msra.mxu0 0.0
        %487 = vmatprep.subr.mxu0 0.0
        %488 = vmatpush2.msra.mxu0 0.0
        %489 = vmatprep.subr.mxu0 0.0
        %490 = vmatpush2.msra.mxu0 0.0
        %491 = vmatprep.subr.mxu0 0.0
        %492 = vmatpush2.msra.mxu0 0.0
        %493 = vmatprep.subr.mxu0 0.0
        %494 = vmatpush2.msra.mxu0 0.0
        %495 = vmatprep.subr.mxu0 0.0
        %496 = vmatpush2.msra.mxu0 0.0
        %497 = vmatprep.subr.mxu0 0.0
        %498 = vmatpush2.msra.mxu0 0.0
        %499 = vmatprep.subr.mxu0 0.0
        %500 = vmatpush2.msra.mxu0 0.0
        %501 = vmatprep.subr.mxu0 0.0
        %502 = vmatpush2.msra.mxu0 0.0
        %503 = vmatprep.subr.mxu0 0.0
        %504 = vmatpush2.msra.mxu0 0.0
        %505 = vmatprep.subr.mxu0 0.0
        %506 = vmatpush2.msra.mxu0 0.0
        %507 = vmatprep.subr.mxu0 0.0
        %508 = vmatpush2.msra.mxu0 0.0
        %509 = vmatprep.subr.mxu0 0.0
        %510 = vmatpush2.msra.mxu0 0.0
        %511 = vmatprep.mubr.f32.mxu0 0.0
        %512 = vmatmul.mubr.f32.gmra.mxu0 %v432
        %v513 = vpop.f32.mrf.mxu0
        %v514 = vadd.f32 %v413, %v513
        %v515 = vpop.f32.mrf.mxu0
        %516 = vmatprep.mubr.f32.mxu0 0.0
        %517 = vmatmul.mubr.f32.gmra.mxu0 %v435
        %v518 = vpop.f32.mrf.mxu0
        %v519 = vadd.f32 %v418, %v518
        %v520 = vpop.f32.mrf.mxu0
        %521 = vmatprep.mubr.f32.mxu0 0.0
        %522 = vmatmul.mubr.f32.gmra.mxu0 %v438
        %v523 = vpop.f32.mrf.mxu0
        %v524 = vadd.f32 %v423, %v523
        %v525 = vpop.f32.mrf.mxu0
        %526 = vmatprep.mubr.f32.mxu0 0.0
        %527 = vmatmul.mubr.f32.gmra.mxu0 %v441
        %v528 = vpop.f32.mrf.mxu0
        %v529 = vadd.f32 %v428, %v528
        %v530 = vpop.f32.mrf.mxu0
        %531 = vdwg.mxu0
        %v532 = vmul.f32 %v514, %v400
        %v533 = vmul.f32 %v519, %v400
        %v534 = vmul.f32 %v524, %v400
        %v535 = vmul.f32 %v529, %v400
        %540 = vrot.lane.b32.xlu0 %v532, 2
        %v541 = vpop.permute.xlu0 %540
        %542 = vrot.lane.b32.xlu0 %v533, 2
        %v543 = vpop.permute.xlu0 %542
        %544 = vrot.lane.b32.xlu0 %v534, 2
        %v545 = vpop.permute.xlu0 %544
        %546 = vrot.lane.b32.xlu0 %v535, 2
        %v547 = vpop.permute.xlu0 %546
        %vm552 = vcmask 15360
        %v553 = vsel %vm552, 0.0, %v541
        %v554 = vsel %vm552, 0.0, %v543
        %v555 = vsel %vm552, 0.0, %v545
        %v556 = vsel %vm552, 0.0, %v547
        %vm557 = vcmask 146432
        %v558 = vsel %vm557, %v553, 0.0
        %v559 = vsel %vm557, %v554, 0.0
        %v560 = vsel %vm557, %v555, 0.0
        %v561 = vsel %vm557, %v556, 0.0
        %566 = vrot.lane.b32.xlu0 %v558, 127
        %v567 = vpop.permute.xlu0 %566
        %568 = vrot.lane.b32.xlu0 %v559, 127
        %v569 = vpop.permute.xlu0 %568
        %570 = vrot.lane.b32.xlu0 %v560, 127
        %v571 = vpop.permute.xlu0 %570
        %572 = vrot.lane.b32.xlu0 %v561, 127
        %v573 = vpop.permute.xlu0 %572
        %578 = vrot.lane.b32.xlu0 %v558, 126
        %v579 = vpop.permute.xlu0 %578
        %580 = vrot.lane.b32.xlu0 %v559, 126
        %v581 = vpop.permute.xlu0 %580
        %582 = vrot.lane.b32.xlu0 %v560, 126
        %v583 = vpop.permute.xlu0 %582
        %584 = vrot.lane.b32.xlu0 %v561, 126
        %v585 = vpop.permute.xlu0 %584
        %590 = vrot.lane.b32.xlu0 %v558, 125
        %v591 = vpop.permute.xlu0 %590
        %592 = vrot.lane.b32.xlu0 %v559, 125
        %v593 = vpop.permute.xlu0 %592
        %594 = vrot.lane.b32.xlu0 %v560, 125
        %v595 = vpop.permute.xlu0 %594
        %596 = vrot.lane.b32.xlu0 %v561, 125
        %v597 = vpop.permute.xlu0 %596
        %602 = vrot.lane.b32.xlu0 %v558, 124
        %v603 = vpop.permute.xlu0 %602
        %604 = vrot.lane.b32.xlu0 %v559, 124
        %v605 = vpop.permute.xlu0 %604
        %606 = vrot.lane.b32.xlu0 %v560, 124
        %v607 = vpop.permute.xlu0 %606
        %608 = vrot.lane.b32.xlu0 %v561, 124
        %v609 = vpop.permute.xlu0 %608
        %v614 = vld [vmem:[%s4] sm:$0xff]
        %v615 = vld [vmem:[%s4 + $0x8] sm:$0xff]
        %v616 = vld [vmem:[%s4 + $0x10] sm:$0xff]
        %v617 = vld [vmem:[%s4 + $0x18] sm:$0xff]
        %v618 = vld [vmem:[%s4 + $0x20] sm:$0xff]
        %v619 = vld [vmem:[%s4 + $0x28] sm:$0xff]
        %v620 = vld [vmem:[%s4 + $0x30] sm:$0xff]
        %v621 = vld [vmem:[%s4 + $0x38] sm:$0xff]
        %v622 = vld [vmem:[%s4 + $0x40] sm:$0xff]
        %v623 = vld [vmem:[%s4 + $0x48] sm:$0xff]
        %v624 = vld [vmem:[%s4 + $0x50] sm:$0xff]
        %v625 = vld [vmem:[%s4 + $0x58] sm:$0xff]
        %v626 = vld [vmem:[%s4 + $0x60] sm:$0xff]
        %v627 = vld [vmem:[%s4 + $0x68] sm:$0xff]
        %v628 = vld [vmem:[%s4 + $0x70] sm:$0xff]
        %v629 = vld [vmem:[%s4 + $0x78] sm:$0xff]
        %v630 = vld [vmem:[%s5] sm:$0xff]
        %v631 = vld [vmem:[%s5 + $0x8] sm:$0xff]
        %v632 = vld [vmem:[%s5 + $0x10] sm:$0xff]
        %v633 = vld [vmem:[%s5 + $0x18] sm:$0xff]
        %v634 = vld [vmem:[%s5 + $0x20] sm:$0xff]
        %v635 = vld [vmem:[%s5 + $0x28] sm:$0xff]
        %v636 = vld [vmem:[%s5 + $0x30] sm:$0xff]
        %v637 = vld [vmem:[%s5 + $0x38] sm:$0xff]
        %639 = vset.pattern.permute.xlu0 0
        %640 = vperm.xlu0 %639, %v630
        %v641 = vpop.permute.xlu0 %640
        %644 = vset.pattern.permute.xlu0 0
        %645 = vperm.xlu0 %644, %v631
        %v646 = vpop.permute.xlu0 %645
        %649 = vset.pattern.permute.xlu0 0
        %650 = vperm.xlu0 %649, %v632
        %v651 = vpop.permute.xlu0 %650
        %654 = vset.pattern.permute.xlu0 0
        %655 = vperm.xlu0 %654, %v633
        %v656 = vpop.permute.xlu0 %655
        %659 = vset.pattern.permute.xlu0 0
        %660 = vperm.xlu0 %659, %v634
        %v661 = vpop.permute.xlu0 %660
        %664 = vset.pattern.permute.xlu0 0
        %665 = vperm.xlu0 %664, %v635
        %v666 = vpop.permute.xlu0 %665
        %669 = vset.pattern.permute.xlu0 0
        %670 = vperm.xlu0 %669, %v636
        %v671 = vpop.permute.xlu0 %670
        %674 = vset.pattern.permute.xlu0 0
        %675 = vperm.xlu0 %674, %v637
        %v676 = vpop.permute.xlu0 %675
        %vm678 = vcmask 261120
        %v680 = vsel %vm678, %v615, 0
        %v683 = vsel %vm678, %v617, 0
        %v686 = vsel %vm678, %v619, 0
        %v689 = vsel %vm678, %v621, 0
        %v692 = vsel %vm678, %v623, 0
        %v695 = vsel %vm678, %v625, 0
        %v698 = vsel %vm678, %v627, 0
        %v701 = vsel %vm678, %v629, 0
        %703 = vmatprep.subr.mxu0 0.0
        %704 = vmatpush1.msra.mxu0 %v597
        %705 = vmatprep.subr.mxu0 0.0
        %706 = vmatpush1.msra.mxu0 %v595
        %707 = vmatprep.subr.mxu0 0.0
        %708 = vmatpush1.msra.mxu0 %v593
        %709 = vmatprep.subr.mxu0 0.0
        %710 = vmatpush1.msra.mxu0 %v591
        %711 = vmatprep.subr.mxu0 0.0
        %712 = vmatpush1.msra.mxu0 %v585
        %713 = vmatprep.subr.mxu0 0.0
        %714 = vmatpush1.msra.mxu0 %v583
        %715 = vmatprep.subr.mxu0 0.0
        %716 = vmatpush1.msra.mxu0 %v581
        %717 = vmatprep.subr.mxu0 0.0
        %718 = vmatpush1.msra.mxu0 %v579
        %719 = vmatprep.subr.mxu0 0.0
        %720 = vmatpush1.msra.mxu0 %v573
        %721 = vmatprep.subr.mxu0 0.0
        %722 = vmatpush1.msra.mxu0 %v571
        %723 = vmatprep.subr.mxu0 0.0
        %724 = vmatpush1.msra.mxu0 %v569
        %725 = vmatprep.subr.mxu0 0.0
        %726 = vmatpush1.msra.mxu0 %v567
        %727 = vmatprep.subr.mxu0 0.0
        %728 = vmatpush1.msra.mxu0 %v561
        %729 = vmatprep.subr.mxu0 0.0
        %730 = vmatpush1.msra.mxu0 %v560
        %731 = vmatprep.subr.mxu0 0.0
        %732 = vmatpush1.msra.mxu0 %v559
        %733 = vmatprep.subr.mxu0 0.0
        %734 = vmatpush1.msra.mxu0 %v558
        %735 = vmatprep.subr.mxu0 0.0
        %736 = vmatpush2.msra.mxu0 0.0
        %737 = vmatprep.subr.mxu0 0.0
        %738 = vmatpush2.msra.mxu0 0.0
        %739 = vmatprep.subr.mxu0 0.0
        %740 = vmatpush2.msra.mxu0 0.0
        %741 = vmatprep.subr.mxu0 0.0
        %742 = vmatpush2.msra.mxu0 0.0
        %743 = vmatprep.subr.mxu0 0.0
        %744 = vmatpush2.msra.mxu0 0.0
        %745 = vmatprep.subr.mxu0 0.0
        %746 = vmatpush2.msra.mxu0 0.0
        %747 = vmatprep.subr.mxu0 0.0
        %748 = vmatpush2.msra.mxu0 0.0
        %749 = vmatprep.subr.mxu0 0.0
        %750 = vmatpush2.msra.mxu0 0.0
        %751 = vmatprep.subr.mxu0 0.0
        %752 = vmatpush2.msra.mxu0 0.0
        %753 = vmatprep.subr.mxu0 0.0
        %754 = vmatpush2.msra.mxu0 0.0
        %755 = vmatprep.subr.mxu0 0.0
        %756 = vmatpush2.msra.mxu0 0.0
        %757 = vmatprep.subr.mxu0 0.0
        %758 = vmatpush2.msra.mxu0 0.0
        %759 = vmatprep.subr.mxu0 0.0
        %760 = vmatpush2.msra.mxu0 %v609
        %761 = vmatprep.subr.mxu0 0.0
        %762 = vmatpush2.msra.mxu0 %v607
        %763 = vmatprep.subr.mxu0 0.0
        %764 = vmatpush2.msra.mxu0 %v605
        %765 = vmatprep.subr.mxu0 0.0
        %766 = vmatpush2.msra.mxu0 %v603
        %767 = vmatprep.mubr.f32.mxu0 %v680
        %768 = vmatmul.mubr.f32.gmra.mxu0 %v614
        %v769 = vpop.f32.mrf.mxu0
        %v770 = vadd.f32 %v641, %v769
        %v771 = vpop.f32.mrf.mxu0
        %772 = vmatprep.mubr.f32.mxu0 %v683
        %773 = vmatmul.mubr.f32.gmra.mxu0 %v616
        %v774 = vpop.f32.mrf.mxu0
        %v775 = vadd.f32 %v646, %v774
        %v776 = vpop.f32.mrf.mxu0
        %777 = vmatprep.mubr.f32.mxu0 %v686
        %778 = vmatmul.mubr.f32.gmra.mxu0 %v618
        %v779 = vpop.f32.mrf.mxu0
        %v780 = vadd.f32 %v651, %v779
        %v781 = vpop.f32.mrf.mxu0
        %782 = vmatprep.mubr.f32.mxu0 %v689
        %783 = vmatmul.mubr.f32.gmra.mxu0 %v620
        %v784 = vpop.f32.mrf.mxu0
        %v785 = vadd.f32 %v656, %v784
        %v786 = vpop.f32.mrf.mxu0
        %787 = vmatprep.mubr.f32.mxu0 %v692
        %788 = vmatmul.mubr.f32.gmra.mxu0 %v622
        %v789 = vpop.f32.mrf.mxu0
        %v790 = vadd.f32 %v661, %v789
        %v791 = vpop.f32.mrf.mxu0
        %792 = vmatprep.mubr.f32.mxu0 %v695
        %793 = vmatmul.mubr.f32.gmra.mxu0 %v624
        %v794 = vpop.f32.mrf.mxu0
        %v795 = vadd.f32 %v666, %v794
        %v796 = vpop.f32.mrf.mxu0
        %797 = vmatprep.mubr.f32.mxu0 %v698
        %798 = vmatmul.mubr.f32.gmra.mxu0 %v626
        %v799 = vpop.f32.mrf.mxu0
        %v800 = vadd.f32 %v671, %v799
        %v801 = vpop.f32.mrf.mxu0
        %802 = vmatprep.mubr.f32.mxu0 %v701
        %803 = vmatmul.mubr.f32.gmra.mxu0 %v628
        %v804 = vpop.f32.mrf.mxu0
        %v805 = vadd.f32 %v676, %v804
        %v806 = vpop.f32.mrf.mxu0
        %807 = vdwg.mxu0
        %v808 = vtanh.pop %v770
        %v809 = vtanh.pop %v775
        %v810 = vtanh.pop %v780
        %v811 = vtanh.pop %v785
        %v812 = vmul.f32 %v790, 0.5
        %v813 = vmul.f32 %v795, 0.5
        %v814 = vmul.f32 %v800, 0.5
        %v815 = vmul.f32 %v805, 0.5
        %v816 = vtanh.pop %v812
        %v817 = vtanh.pop %v813
        %v818 = vtanh.pop %v814
        %v819 = vtanh.pop %v815
        %v820 = vadd.f32 %v816, 1.0
        %v821 = vadd.f32 %v817, 1.0
        %v822 = vadd.f32 %v818, 1.0
        %v823 = vadd.f32 %v819, 1.0
        %v824 = vmul.f32 %v820, 0.5
        %v825 = vmul.f32 %v821, 0.5
        %v826 = vmul.f32 %v822, 0.5
        %v827 = vmul.f32 %v823, 0.5
        %v828 = vmul.f32 %v808, %v824
        %v829 = vmul.f32 %v809, %v825
        %v830 = vmul.f32 %v810, %v826
        %v831 = vmul.f32 %v811, %v827
        %v832 = vld [vmem:[%s6] sm:$0xff]
        %v833 = vld [vmem:[%s6 + $0x8] sm:$0xff]
        %v834 = vld [vmem:[%s6 + $0x10] sm:$0xff]
        %v835 = vld [vmem:[%s6 + $0x18] sm:$0xff]
        %v836 = vld [vmem:[%s6 + $0x20] sm:$0xff]
        %v837 = vld [vmem:[%s6 + $0x28] sm:$0xff]
        %v838 = vld [vmem:[%s6 + $0x30] sm:$0xff]
        %v839 = vld [vmem:[%s6 + $0x38] sm:$0xff]
        %v840 = vld [vmem:[%s7] sm:$0xff]
        %v841 = vld [vmem:[%s7 + $0x8] sm:$0xff]
        %v842 = vld [vmem:[%s7 + $0x10] sm:$0xff]
        %v843 = vld [vmem:[%s7 + $0x18] sm:$0xff]
        %v844 = vld [vmem:[%s7 + $0x20] sm:$0xff]
        %v845 = vld [vmem:[%s7 + $0x28] sm:$0xff]
        %v846 = vld [vmem:[%s7 + $0x30] sm:$0xff]
        %v847 = vld [vmem:[%s7 + $0x38] sm:$0xff]
        %849 = vset.pattern.permute.xlu0 0
        %850 = vperm.xlu0 %849, %v840
        %v851 = vpop.permute.xlu0 %850
        %854 = vset.pattern.permute.xlu0 0
        %855 = vperm.xlu0 %854, %v841
        %v856 = vpop.permute.xlu0 %855
        %859 = vset.pattern.permute.xlu0 0
        %860 = vperm.xlu0 %859, %v842
        %v861 = vpop.permute.xlu0 %860
        %864 = vset.pattern.permute.xlu0 0
        %865 = vperm.xlu0 %864, %v843
        %v866 = vpop.permute.xlu0 %865
        %869 = vset.pattern.permute.xlu0 0
        %870 = vperm.xlu0 %869, %v844
        %v871 = vpop.permute.xlu0 %870
        %874 = vset.pattern.permute.xlu0 0
        %875 = vperm.xlu0 %874, %v845
        %v876 = vpop.permute.xlu0 %875
        %879 = vset.pattern.permute.xlu0 0
        %880 = vperm.xlu0 %879, %v846
        %v881 = vpop.permute.xlu0 %880
        %884 = vset.pattern.permute.xlu0 0
        %885 = vperm.xlu0 %884, %v847
        %v886 = vpop.permute.xlu0 %885
        %v889 = vsel %vm678, %v832, 0
        %v892 = vsel %vm678, %v833, 0
        %v895 = vsel %vm678, %v834, 0
        %v898 = vsel %vm678, %v835, 0
        %v901 = vsel %vm678, %v836, 0
        %v904 = vsel %vm678, %v837, 0
        %v907 = vsel %vm678, %v838, 0
        %v910 = vsel %vm678, %v839, 0
        %912 = vmatprep.subr.mxu0 0.0
        %913 = vmatpush1.msra.mxu0 0.0
        %914 = vmatprep.subr.mxu0 0.0
        %915 = vmatpush1.msra.mxu0 0.0
        %916 = vmatprep.subr.mxu0 0.0
        %917 = vmatpush1.msra.mxu0 0.0
        %918 = vmatprep.subr.mxu0 0.0
        %919 = vmatpush1.msra.mxu0 0.0
        %920 = vmatprep.subr.mxu0 0.0
        %921 = vmatpush1.msra.mxu0 0.0
        %922 = vmatprep.subr.mxu0 0.0
        %923 = vmatpush1.msra.mxu0 0.0
        %924 = vmatprep.subr.mxu0 0.0
        %925 = vmatpush1.msra.mxu0 0.0
        %926 = vmatprep.subr.mxu0 0.0
        %927 = vmatpush1.msra.mxu0 0.0
        %928 = vmatprep.subr.mxu0 0.0
        %929 = vmatpush1.msra.mxu0 0.0
        %930 = vmatprep.subr.mxu0 0.0
        %931 = vmatpush1.msra.mxu0 0.0
        %932 = vmatprep.subr.mxu0 0.0
        %933 = vmatpush1.msra.mxu0 0.0
        %934 = vmatprep.subr.mxu0 0.0
        %935 = vmatpush1.msra.mxu0 0.0
        %936 = vmatprep.subr.mxu0 0.0
        %937 = vmatpush1.msra.mxu0 %v831
        %938 = vmatprep.subr.mxu0 0.0
        %939 = vmatpush1.msra.mxu0 %v830
        %940 = vmatprep.subr.mxu0 0.0
        %941 = vmatpush1.msra.mxu0 %v829
        %942 = vmatprep.subr.mxu0 0.0
        %943 = vmatpush1.msra.mxu0 %v828
        %944 = vmatprep.subr.mxu0 0.0
        %945 = vmatpush2.msra.mxu0 0.0
        %946 = vmatprep.subr.mxu0 0.0
        %947 = vmatpush2.msra.mxu0 0.0
        %948 = vmatprep.subr.mxu0 0.0
        %949 = vmatpush2.msra.mxu0 0.0
        %950 = vmatprep.subr.mxu0 0.0
        %951 = vmatpush2.msra.mxu0 0.0
        %952 = vmatprep.subr.mxu0 0.0
        %953 = vmatpush2.msra.mxu0 0.0
        %954 = vmatprep.subr.mxu0 0.0
        %955 = vmatpush2.msra.mxu0 0.0
        %956 = vmatprep.subr.mxu0 0.0
        %957 = vmatpush2.msra.mxu0 0.0
        %958 = vmatprep.subr.mxu0 0.0
        %959 = vmatpush2.msra.mxu0 0.0
        %960 = vmatprep.subr.mxu0 0.0
        %961 = vmatpush2.msra.mxu0 0.0
        %962 = vmatprep.subr.mxu0 0.0
        %963 = vmatpush2.msra.mxu0 0.0
        %964 = vmatprep.subr.mxu0 0.0
        %965 = vmatpush2.msra.mxu0 0.0
        %966 = vmatprep.subr.mxu0 0.0
        %967 = vmatpush2.msra.mxu0 0.0
        %968 = vmatprep.subr.mxu0 0.0
        %969 = vmatpush2.msra.mxu0 0.0
        %970 = vmatprep.subr.mxu0 0.0
        %971 = vmatpush2.msra.mxu0 0.0
        %972 = vmatprep.subr.mxu0 0.0
        %973 = vmatpush2.msra.mxu0 0.0
        %974 = vmatprep.subr.mxu0 0.0
        %975 = vmatpush2.msra.mxu0 0.0
        %976 = vmatprep.mubr.f32.mxu0 0.0
        %977 = vmatmul.mubr.f32.gmra.mxu0 %v889
        %v978 = vpop.f32.mrf.mxu0
        %v979 = vadd.f32 %v851, %v978
        %v980 = vpop.f32.mrf.mxu0
        %981 = vmatprep.mubr.f32.mxu0 0.0
        %982 = vmatmul.mubr.f32.gmra.mxu0 %v892
        %v983 = vpop.f32.mrf.mxu0
        %v984 = vadd.f32 %v856, %v983
        %v985 = vpop.f32.mrf.mxu0
        %986 = vmatprep.mubr.f32.mxu0 0.0
        %987 = vmatmul.mubr.f32.gmra.mxu0 %v895
        %v988 = vpop.f32.mrf.mxu0
        %v989 = vadd.f32 %v861, %v988
        %v990 = vpop.f32.mrf.mxu0
        %991 = vmatprep.mubr.f32.mxu0 0.0
        %992 = vmatmul.mubr.f32.gmra.mxu0 %v898
        %v993 = vpop.f32.mrf.mxu0
        %v994 = vadd.f32 %v866, %v993
        %v995 = vpop.f32.mrf.mxu0
        %996 = vmatprep.mubr.f32.mxu0 0.0
        %997 = vmatmul.mubr.f32.gmra.mxu0 %v901
        %v998 = vpop.f32.mrf.mxu0
        %v999 = vadd.f32 %v871, %v998
        %v1000 = vpop.f32.mrf.mxu0
        %1001 = vmatprep.mubr.f32.mxu0 0.0
        %1002 = vmatmul.mubr.f32.gmra.mxu0 %v904
        %v1003 = vpop.f32.mrf.mxu0
        %v1004 = vadd.f32 %v876, %v1003
        %v1005 = vpop.f32.mrf.mxu0
        %1006 = vmatprep.mubr.f32.mxu0 0.0
        %1007 = vmatmul.mubr.f32.gmra.mxu0 %v907
        %v1008 = vpop.f32.mrf.mxu0
        %v1009 = vadd.f32 %v881, %v1008
        %v1010 = vpop.f32.mrf.mxu0
        %1011 = vmatprep.mubr.f32.mxu0 0.0
        %1012 = vmatmul.mubr.f32.gmra.mxu0 %v910
        %v1013 = vpop.f32.mrf.mxu0
        %v1014 = vadd.f32 %v886, %v1013
        %v1015 = vpop.f32.mrf.mxu0
        %1016 = vdwg.mxu0
        %v1017 = vadd.f32 %v532, %v979
        %v1018 = vadd.f32 %v533, %v984
        %v1019 = vadd.f32 %v534, %v989
        %v1020 = vadd.f32 %v535, %v994
        %v1021 = vmul.f32 %v1017, %v400
        %v1022 = vmul.f32 %v1018, %v400
        %v1023 = vmul.f32 %v1019, %v400
        %v1024 = vmul.f32 %v1020, %v400
        %v1025 = vadd.f32 %v999, 0.0
        %v1026 = vadd.f32 %v1004, 0.0
        %v1027 = vadd.f32 %v1009, 0.0
        %v1028 = vadd.f32 %v1014, 0.0
        %1033 = vrot.lane.b32.xlu0 %v1021, 2
        %v1034 = vpop.permute.xlu0 %1033
        %1035 = vrot.lane.b32.xlu0 %v1022, 2
        %v1036 = vpop.permute.xlu0 %1035
        %1037 = vrot.lane.b32.xlu0 %v1023, 2
        %v1038 = vpop.permute.xlu0 %1037
        %1039 = vrot.lane.b32.xlu0 %v1024, 2
        %v1040 = vpop.permute.xlu0 %1039
        %v1045 = vsel %vm552, 0.0, %v1034
        %v1046 = vsel %vm552, 0.0, %v1036
        %v1047 = vsel %vm552, 0.0, %v1038
        %v1048 = vsel %vm552, 0.0, %v1040
        %v1049 = vsel %vm557, %v1045, 0.0
        %v1050 = vsel %vm557, %v1046, 0.0
        %v1051 = vsel %vm557, %v1047, 0.0
        %v1052 = vsel %vm557, %v1048, 0.0
        %1057 = vrot.lane.b32.xlu0 %v1049, 127
        %v1058 = vpop.permute.xlu0 %1057
        %1059 = vrot.lane.b32.xlu0 %v1050, 127
        %v1060 = vpop.permute.xlu0 %1059
        %1061 = vrot.lane.b32.xlu0 %v1051, 127
        %v1062 = vpop.permute.xlu0 %1061
        %1063 = vrot.lane.b32.xlu0 %v1052, 127
        %v1064 = vpop.permute.xlu0 %1063
        %1069 = vrot.lane.b32.xlu0 %v1049, 126
        %v1070 = vpop.permute.xlu0 %1069
        %1071 = vrot.lane.b32.xlu0 %v1050, 126
        %v1072 = vpop.permute.xlu0 %1071
        %1073 = vrot.lane.b32.xlu0 %v1051, 126
        %v1074 = vpop.permute.xlu0 %1073
        %1075 = vrot.lane.b32.xlu0 %v1052, 126
        %v1076 = vpop.permute.xlu0 %1075
        %1081 = vrot.lane.b32.xlu0 %v1049, 125
        %v1082 = vpop.permute.xlu0 %1081
        %1083 = vrot.lane.b32.xlu0 %v1050, 125
        %v1084 = vpop.permute.xlu0 %1083
        %1085 = vrot.lane.b32.xlu0 %v1051, 125
        %v1086 = vpop.permute.xlu0 %1085
        %1087 = vrot.lane.b32.xlu0 %v1052, 125
        %v1088 = vpop.permute.xlu0 %1087
        %1093 = vrot.lane.b32.xlu0 %v1049, 124
        %v1094 = vpop.permute.xlu0 %1093
        %1095 = vrot.lane.b32.xlu0 %v1050, 124
        %v1096 = vpop.permute.xlu0 %1095
        %1097 = vrot.lane.b32.xlu0 %v1051, 124
        %v1098 = vpop.permute.xlu0 %1097
        %1099 = vrot.lane.b32.xlu0 %v1052, 124
        %v1100 = vpop.permute.xlu0 %1099
        %s1105 = scalar_lea.vmem %s4, 128
        %v1106 = vld [vmem:[%s1105] sm:$0xff]
        %v1107 = vld [vmem:[%s1105 + $0x8] sm:$0xff]
        %v1108 = vld [vmem:[%s1105 + $0x10] sm:$0xff]
        %v1109 = vld [vmem:[%s1105 + $0x18] sm:$0xff]
        %v1110 = vld [vmem:[%s1105 + $0x20] sm:$0xff]
        %v1111 = vld [vmem:[%s1105 + $0x28] sm:$0xff]
        %v1112 = vld [vmem:[%s1105 + $0x30] sm:$0xff]
        %v1113 = vld [vmem:[%s1105 + $0x38] sm:$0xff]
        %v1114 = vld [vmem:[%s1105 + $0x40] sm:$0xff]
        %v1115 = vld [vmem:[%s1105 + $0x48] sm:$0xff]
        %v1116 = vld [vmem:[%s1105 + $0x50] sm:$0xff]
        %v1117 = vld [vmem:[%s1105 + $0x58] sm:$0xff]
        %v1118 = vld [vmem:[%s1105 + $0x60] sm:$0xff]
        %v1119 = vld [vmem:[%s1105 + $0x68] sm:$0xff]
        %v1120 = vld [vmem:[%s1105 + $0x70] sm:$0xff]
        %v1121 = vld [vmem:[%s1105 + $0x78] sm:$0xff]
        %s1122 = scalar_lea.vmem %s5, 64
        %v1123 = vld [vmem:[%s1122] sm:$0xff]
        %v1124 = vld [vmem:[%s1122 + $0x8] sm:$0xff]
        %v1125 = vld [vmem:[%s1122 + $0x10] sm:$0xff]
        %v1126 = vld [vmem:[%s1122 + $0x18] sm:$0xff]
        %v1127 = vld [vmem:[%s1122 + $0x20] sm:$0xff]
        %v1128 = vld [vmem:[%s1122 + $0x28] sm:$0xff]
        %v1129 = vld [vmem:[%s1122 + $0x30] sm:$0xff]
        %v1130 = vld [vmem:[%s1122 + $0x38] sm:$0xff]
        %1132 = vset.pattern.permute.xlu0 0
        %1133 = vperm.xlu0 %1132, %v1123
        %v1134 = vpop.permute.xlu0 %1133
        %1137 = vset.pattern.permute.xlu0 0
        %1138 = vperm.xlu0 %1137, %v1124
        %v1139 = vpop.permute.xlu0 %1138
        %1142 = vset.pattern.permute.xlu0 0
        %1143 = vperm.xlu0 %1142, %v1125
        %v1144 = vpop.permute.xlu0 %1143
        %1147 = vset.pattern.permute.xlu0 0
        %1148 = vperm.xlu0 %1147, %v1126
        %v1149 = vpop.permute.xlu0 %1148
        %1152 = vset.pattern.permute.xlu0 0
        %1153 = vperm.xlu0 %1152, %v1127
        %v1154 = vpop.permute.xlu0 %1153
        %1157 = vset.pattern.permute.xlu0 0
        %1158 = vperm.xlu0 %1157, %v1128
        %v1159 = vpop.permute.xlu0 %1158
        %1162 = vset.pattern.permute.xlu0 0
        %1163 = vperm.xlu0 %1162, %v1129
        %v1164 = vpop.permute.xlu0 %1163
        %1167 = vset.pattern.permute.xlu0 0
        %1168 = vperm.xlu0 %1167, %v1130
        %v1169 = vpop.permute.xlu0 %1168
        %v1172 = vsel %vm678, %v1107, 0
        %v1175 = vsel %vm678, %v1109, 0
        %v1178 = vsel %vm678, %v1111, 0
        %v1181 = vsel %vm678, %v1113, 0
        %v1184 = vsel %vm678, %v1115, 0
        %v1187 = vsel %vm678, %v1117, 0
        %v1190 = vsel %vm678, %v1119, 0
        %v1193 = vsel %vm678, %v1121, 0
        %1195 = vmatprep.subr.mxu0 0.0
        %1196 = vmatpush1.msra.mxu0 %v1088
        %1197 = vmatprep.subr.mxu0 0.0
        %1198 = vmatpush1.msra.mxu0 %v1086
        %1199 = vmatprep.subr.mxu0 0.0
        %1200 = vmatpush1.msra.mxu0 %v1084
        %1201 = vmatprep.subr.mxu0 0.0
        %1202 = vmatpush1.msra.mxu0 %v1082
        %1203 = vmatprep.subr.mxu0 0.0
        %1204 = vmatpush1.msra.mxu0 %v1076
        %1205 = vmatprep.subr.mxu0 0.0
        %1206 = vmatpush1.msra.mxu0 %v1074
        %1207 = vmatprep.subr.mxu0 0.0
        %1208 = vmatpush1.msra.mxu0 %v1072
        %1209 = vmatprep.subr.mxu0 0.0
        %1210 = vmatpush1.msra.mxu0 %v1070
        %1211 = vmatprep.subr.mxu0 0.0
        %1212 = vmatpush1.msra.mxu0 %v1064
        %1213 = vmatprep.subr.mxu0 0.0
        %1214 = vmatpush1.msra.mxu0 %v1062
        %1215 = vmatprep.subr.mxu0 0.0
        %1216 = vmatpush1.msra.mxu0 %v1060
        %1217 = vmatprep.subr.mxu0 0.0
        %1218 = vmatpush1.msra.mxu0 %v1058
        %1219 = vmatprep.subr.mxu0 0.0
        %1220 = vmatpush1.msra.mxu0 %v1052
        %1221 = vmatprep.subr.mxu0 0.0
        %1222 = vmatpush1.msra.mxu0 %v1051
        %1223 = vmatprep.subr.mxu0 0.0
        %1224 = vmatpush1.msra.mxu0 %v1050
        %1225 = vmatprep.subr.mxu0 0.0
        %1226 = vmatpush1.msra.mxu0 %v1049
        %1227 = vmatprep.subr.mxu0 0.0
        %1228 = vmatpush2.msra.mxu0 0.0
        %1229 = vmatprep.subr.mxu0 0.0
        %1230 = vmatpush2.msra.mxu0 0.0
        %1231 = vmatprep.subr.mxu0 0.0
        %1232 = vmatpush2.msra.mxu0 0.0
        %1233 = vmatprep.subr.mxu0 0.0
        %1234 = vmatpush2.msra.mxu0 0.0
        %1235 = vmatprep.subr.mxu0 0.0
        %1236 = vmatpush2.msra.mxu0 0.0
        %1237 = vmatprep.subr.mxu0 0.0
        %1238 = vmatpush2.msra.mxu0 0.0
        %1239 = vmatprep.subr.mxu0 0.0
        %1240 = vmatpush2.msra.mxu0 0.0
        %1241 = vmatprep.subr.mxu0 0.0
        %1242 = vmatpush2.msra.mxu0 0.0
        %1243 = vmatprep.subr.mxu0 0.0
        %1244 = vmatpush2.msra.mxu0 0.0
        %1245 = vmatprep.subr.mxu0 0.0
        %1246 = vmatpush2.msra.mxu0 0.0
        %1247 = vmatprep.subr.mxu0 0.0
        %1248 = vmatpush2.msra.mxu0 0.0
        %1249 = vmatprep.subr.mxu0 0.0
        %1250 = vmatpush2.msra.mxu0 0.0
        %1251 = vmatprep.subr.mxu0 0.0
        %1252 = vmatpush2.msra.mxu0 %v1100
        %1253 = vmatprep.subr.mxu0 0.0
        %1254 = vmatpush2.msra.mxu0 %v1098
        %1255 = vmatprep.subr.mxu0 0.0
        %1256 = vmatpush2.msra.mxu0 %v1096
        %1257 = vmatprep.subr.mxu0 0.0
        %1258 = vmatpush2.msra.mxu0 %v1094
        %1259 = vmatprep.mubr.f32.mxu0 %v1172
        %1260 = vmatmul.mubr.f32.gmra.mxu0 %v1106
        %v1261 = vpop.f32.mrf.mxu0
        %v1262 = vadd.f32 %v1134, %v1261
        %v1263 = vpop.f32.mrf.mxu0
        %1264 = vmatprep.mubr.f32.mxu0 %v1175
        %1265 = vmatmul.mubr.f32.gmra.mxu0 %v1108
        %v1266 = vpop.f32.mrf.mxu0
        %v1267 = vadd.f32 %v1139, %v1266
        %v1268 = vpop.f32.mrf.mxu0
        %1269 = vmatprep.mubr.f32.mxu0 %v1178
        %1270 = vmatmul.mubr.f32.gmra.mxu0 %v1110
        %v1271 = vpop.f32.mrf.mxu0
        %v1272 = vadd.f32 %v1144, %v1271
        %v1273 = vpop.f32.mrf.mxu0
        %1274 = vmatprep.mubr.f32.mxu0 %v1181
        %1275 = vmatmul.mubr.f32.gmra.mxu0 %v1112
        %v1276 = vpop.f32.mrf.mxu0
        %v1277 = vadd.f32 %v1149, %v1276
        %v1278 = vpop.f32.mrf.mxu0
        %1279 = vmatprep.mubr.f32.mxu0 %v1184
        %1280 = vmatmul.mubr.f32.gmra.mxu0 %v1114
        %v1281 = vpop.f32.mrf.mxu0
        %v1282 = vadd.f32 %v1154, %v1281
        %v1283 = vpop.f32.mrf.mxu0
        %1284 = vmatprep.mubr.f32.mxu0 %v1187
        %1285 = vmatmul.mubr.f32.gmra.mxu0 %v1116
        %v1286 = vpop.f32.mrf.mxu0
        %v1287 = vadd.f32 %v1159, %v1286
        %v1288 = vpop.f32.mrf.mxu0
        %1289 = vmatprep.mubr.f32.mxu0 %v1190
        %1290 = vmatmul.mubr.f32.gmra.mxu0 %v1118
        %v1291 = vpop.f32.mrf.mxu0
        %v1292 = vadd.f32 %v1164, %v1291
        %v1293 = vpop.f32.mrf.mxu0
        %1294 = vmatprep.mubr.f32.mxu0 %v1193
        %1295 = vmatmul.mubr.f32.gmra.mxu0 %v1120
        %v1296 = vpop.f32.mrf.mxu0
        %v1297 = vadd.f32 %v1169, %v1296
        %v1298 = vpop.f32.mrf.mxu0
        %1299 = vdwg.mxu0
        %v1300 = vtanh.pop %v1262
        %v1301 = vtanh.pop %v1267
        %v1302 = vtanh.pop %v1272
        %v1303 = vtanh.pop %v1277
        %v1304 = vmul.f32 %v1282, 0.5
        %v1305 = vmul.f32 %v1287, 0.5
        %v1306 = vmul.f32 %v1292, 0.5
        %v1307 = vmul.f32 %v1297, 0.5
        %v1308 = vtanh.pop %v1304
        %v1309 = vtanh.pop %v1305
        %v1310 = vtanh.pop %v1306
        %v1311 = vtanh.pop %v1307
        %v1312 = vadd.f32 %v1308, 1.0
        %v1313 = vadd.f32 %v1309, 1.0
        %v1314 = vadd.f32 %v1310, 1.0
        %v1315 = vadd.f32 %v1311, 1.0
        %v1316 = vmul.f32 %v1312, 0.5
        %v1317 = vmul.f32 %v1313, 0.5
        %v1318 = vmul.f32 %v1314, 0.5
        %v1319 = vmul.f32 %v1315, 0.5
        %v1320 = vmul.f32 %v1300, %v1316
        %v1321 = vmul.f32 %v1301, %v1317
        %v1322 = vmul.f32 %v1302, %v1318
        %v1323 = vmul.f32 %v1303, %v1319
        %s1324 = scalar_lea.vmem %s6, 64
        %v1325 = vld [vmem:[%s1324] sm:$0xff]
        %v1326 = vld [vmem:[%s1324 + $0x8] sm:$0xff]
        %v1327 = vld [vmem:[%s1324 + $0x10] sm:$0xff]
        %v1328 = vld [vmem:[%s1324 + $0x18] sm:$0xff]
        %v1329 = vld [vmem:[%s1324 + $0x20] sm:$0xff]
        %v1330 = vld [vmem:[%s1324 + $0x28] sm:$0xff]
        %v1331 = vld [vmem:[%s1324 + $0x30] sm:$0xff]
        %v1332 = vld [vmem:[%s1324 + $0x38] sm:$0xff]
        %s1333 = scalar_lea.vmem %s7, 64
        %v1334 = vld [vmem:[%s1333] sm:$0xff]
        %v1335 = vld [vmem:[%s1333 + $0x8] sm:$0xff]
        %v1336 = vld [vmem:[%s1333 + $0x10] sm:$0xff]
        %v1337 = vld [vmem:[%s1333 + $0x18] sm:$0xff]
        %v1338 = vld [vmem:[%s1333 + $0x20] sm:$0xff]
        %v1339 = vld [vmem:[%s1333 + $0x28] sm:$0xff]
        %v1340 = vld [vmem:[%s1333 + $0x30] sm:$0xff]
        %v1341 = vld [vmem:[%s1333 + $0x38] sm:$0xff]
        %1343 = vset.pattern.permute.xlu0 0
        %1344 = vperm.xlu0 %1343, %v1334
        %v1345 = vpop.permute.xlu0 %1344
        %1348 = vset.pattern.permute.xlu0 0
        %1349 = vperm.xlu0 %1348, %v1335
        %v1350 = vpop.permute.xlu0 %1349
        %1353 = vset.pattern.permute.xlu0 0
        %1354 = vperm.xlu0 %1353, %v1336
        %v1355 = vpop.permute.xlu0 %1354
        %1358 = vset.pattern.permute.xlu0 0
        %1359 = vperm.xlu0 %1358, %v1337
        %v1360 = vpop.permute.xlu0 %1359
        %1363 = vset.pattern.permute.xlu0 0
        %1364 = vperm.xlu0 %1363, %v1338
        %v1365 = vpop.permute.xlu0 %1364
        %1368 = vset.pattern.permute.xlu0 0
        %1369 = vperm.xlu0 %1368, %v1339
        %v1370 = vpop.permute.xlu0 %1369
        %1373 = vset.pattern.permute.xlu0 0
        %1374 = vperm.xlu0 %1373, %v1340
        %v1375 = vpop.permute.xlu0 %1374
        %1378 = vset.pattern.permute.xlu0 0
        %1379 = vperm.xlu0 %1378, %v1341
        %v1380 = vpop.permute.xlu0 %1379
        %v1383 = vsel %vm678, %v1325, 0
        %v1386 = vsel %vm678, %v1326, 0
        %v1389 = vsel %vm678, %v1327, 0
        %v1392 = vsel %vm678, %v1328, 0
        %v1395 = vsel %vm678, %v1329, 0
        %v1398 = vsel %vm678, %v1330, 0
        %v1401 = vsel %vm678, %v1331, 0
        %v1404 = vsel %vm678, %v1332, 0
        %1406 = vmatprep.subr.mxu0 0.0
        %1407 = vmatpush1.msra.mxu0 0.0
        %1408 = vmatprep.subr.mxu0 0.0
        %1409 = vmatpush1.msra.mxu0 0.0
        %1410 = vmatprep.subr.mxu0 0.0
        %1411 = vmatpush1.msra.mxu0 0.0
        %1412 = vmatprep.subr.mxu0 0.0
        %1413 = vmatpush1.msra.mxu0 0.0
        %1414 = vmatprep.subr.mxu0 0.0
        %1415 = vmatpush1.msra.mxu0 0.0
        %1416 = vmatprep.subr.mxu0 0.0
        %1417 = vmatpush1.msra.mxu0 0.0
        %1418 = vmatprep.subr.mxu0 0.0
        %1419 = vmatpush1.msra.mxu0 0.0
        %1420 = vmatprep.subr.mxu0 0.0
        %1421 = vmatpush1.msra.mxu0 0.0
        %1422 = vmatprep.subr.mxu0 0.0
        %1423 = vmatpush1.msra.mxu0 0.0
        %1424 = vmatprep.subr.mxu0 0.0
        %1425 = vmatpush1.msra.mxu0 0.0
        %1426 = vmatprep.subr.mxu0 0.0
        %1427 = vmatpush1.msra.mxu0 0.0
        %1428 = vmatprep.subr.mxu0 0.0
        %1429 = vmatpush1.msra.mxu0 0.0
        %1430 = vmatprep.subr.mxu0 0.0
        %1431 = vmatpush1.msra.mxu0 %v1323
        %1432 = vmatprep.subr.mxu0 0.0
        %1433 = vmatpush1.msra.mxu0 %v1322
        %1434 = vmatprep.subr.mxu0 0.0
        %1435 = vmatpush1.msra.mxu0 %v1321
        %1436 = vmatprep.subr.mxu0 0.0
        %1437 = vmatpush1.msra.mxu0 %v1320
        %1438 = vmatprep.subr.mxu0 0.0
        %1439 = vmatpush2.msra.mxu0 0.0
        %1440 = vmatprep.subr.mxu0 0.0
        %1441 = vmatpush2.msra.mxu0 0.0
        %1442 = vmatprep.subr.mxu0 0.0
        %1443 = vmatpush2.msra.mxu0 0.0
        %1444 = vmatprep.subr.mxu0 0.0
        %1445 = vmatpush2.msra.mxu0 0.0
        %1446 = vmatprep.subr.mxu0 0.0
        %1447 = vmatpush2.msra.mxu0 0.0
        %1448 = vmatprep.subr.mxu0 0.0
        %1449 = vmatpush2.msra.mxu0 0.0
        %1450 = vmatprep.subr.mxu0 0.0
        %1451 = vmatpush2.msra.mxu0 0.0
        %1452 = vmatprep.subr.mxu0 0.0
        %1453 = vmatpush2.msra.mxu0 0.0
        %1454 = vmatprep.subr.mxu0 0.0
        %1455 = vmatpush2.msra.mxu0 0.0
        %1456 = vmatprep.subr.mxu0 0.0
        %1457 = vmatpush2.msra.mxu0 0.0
        %1458 = vmatprep.subr.mxu0 0.0
        %1459 = vmatpush2.msra.mxu0 0.0
        %1460 = vmatprep.subr.mxu0 0.0
        %1461 = vmatpush2.msra.mxu0 0.0
        %1462 = vmatprep.subr.mxu0 0.0
        %1463 = vmatpush2.msra.mxu0 0.0
        %1464 = vmatprep.subr.mxu0 0.0
        %1465 = vmatpush2.msra.mxu0 0.0
        %1466 = vmatprep.subr.mxu0 0.0
        %1467 = vmatpush2.msra.mxu0 0.0
        %1468 = vmatprep.subr.mxu0 0.0
        %1469 = vmatpush2.msra.mxu0 0.0
        %1470 = vmatprep.mubr.f32.mxu0 0.0
        %1471 = vmatmul.mubr.f32.gmra.mxu0 %v1383
        %v1472 = vpop.f32.mrf.mxu0
        %v1473 = vadd.f32 %v1345, %v1472
        %v1474 = vpop.f32.mrf.mxu0
        %1475 = vmatprep.mubr.f32.mxu0 0.0
        %1476 = vmatmul.mubr.f32.gmra.mxu0 %v1386
        %v1477 = vpop.f32.mrf.mxu0
        %v1478 = vadd.f32 %v1350, %v1477
        %v1479 = vpop.f32.mrf.mxu0
        %1480 = vmatprep.mubr.f32.mxu0 0.0
        %1481 = vmatmul.mubr.f32.gmra.mxu0 %v1389
        %v1482 = vpop.f32.mrf.mxu0
        %v1483 = vadd.f32 %v1355, %v1482
        %v1484 = vpop.f32.mrf.mxu0
        %1485 = vmatprep.mubr.f32.mxu0 0.0
        %1486 = vmatmul.mubr.f32.gmra.mxu0 %v1392
        %v1487 = vpop.f32.mrf.mxu0
        %v1488 = vadd.f32 %v1360, %v1487
        %v1489 = vpop.f32.mrf.mxu0
        %1490 = vmatprep.mubr.f32.mxu0 0.0
        %1491 = vmatmul.mubr.f32.gmra.mxu0 %v1395
        %v1492 = vpop.f32.mrf.mxu0
        %v1493 = vadd.f32 %v1365, %v1492
        %v1494 = vpop.f32.mrf.mxu0
        %1495 = vmatprep.mubr.f32.mxu0 0.0
        %1496 = vmatmul.mubr.f32.gmra.mxu0 %v1398
        %v1497 = vpop.f32.mrf.mxu0
        %v1498 = vadd.f32 %v1370, %v1497
        %v1499 = vpop.f32.mrf.mxu0
        %1500 = vmatprep.mubr.f32.mxu0 0.0
        %1501 = vmatmul.mubr.f32.gmra.mxu0 %v1401
        %v1502 = vpop.f32.mrf.mxu0
        %v1503 = vadd.f32 %v1375, %v1502
        %v1504 = vpop.f32.mrf.mxu0
        %1505 = vmatprep.mubr.f32.mxu0 0.0
        %1506 = vmatmul.mubr.f32.gmra.mxu0 %v1404
        %v1507 = vpop.f32.mrf.mxu0
        %v1508 = vadd.f32 %v1380, %v1507
        %v1509 = vpop.f32.mrf.mxu0
        %1510 = vdwg.mxu0
        %v1511 = vadd.f32 %v1021, %v1473
        %v1512 = vadd.f32 %v1022, %v1478
        %v1513 = vadd.f32 %v1023, %v1483
        %v1514 = vadd.f32 %v1024, %v1488
        %v1515 = vmul.f32 %v1511, %v400
        %v1516 = vmul.f32 %v1512, %v400
        %v1517 = vmul.f32 %v1513, %v400
        %v1518 = vmul.f32 %v1514, %v400
        %v1519 = vadd.f32 %v1025, %v1493
        %v1520 = vadd.f32 %v1026, %v1498
        %v1521 = vadd.f32 %v1027, %v1503
        %v1522 = vadd.f32 %v1028, %v1508
        %1527 = vrot.lane.b32.xlu0 %v1515, 2
        %v1528 = vpop.permute.xlu0 %1527
        %1529 = vrot.lane.b32.xlu0 %v1516, 2
        %v1530 = vpop.permute.xlu0 %1529
        %1531 = vrot.lane.b32.xlu0 %v1517, 2
        %v1532 = vpop.permute.xlu0 %1531
        %1533 = vrot.lane.b32.xlu0 %v1518, 2
        %v1534 = vpop.permute.xlu0 %1533
        %v1539 = vsel %vm552, 0.0, %v1528
        %v1540 = vsel %vm552, 0.0, %v1530
        %v1541 = vsel %vm552, 0.0, %v1532
        %v1542 = vsel %vm552, 0.0, %v1534
        %v1543 = vsel %vm557, %v1539, 0.0
        %v1544 = vsel %vm557, %v1540, 0.0
        %v1545 = vsel %vm557, %v1541, 0.0
        %v1546 = vsel %vm557, %v1542, 0.0
        %1551 = vrot.lane.b32.xlu0 %v1543, 127
        %v1552 = vpop.permute.xlu0 %1551
        %1553 = vrot.lane.b32.xlu0 %v1544, 127
        %v1554 = vpop.permute.xlu0 %1553
        %1555 = vrot.lane.b32.xlu0 %v1545, 127
        %v1556 = vpop.permute.xlu0 %1555
        %1557 = vrot.lane.b32.xlu0 %v1546, 127
        %v1558 = vpop.permute.xlu0 %1557
        %1563 = vrot.lane.b32.xlu0 %v1543, 126
        %v1564 = vpop.permute.xlu0 %1563
        %1565 = vrot.lane.b32.xlu0 %v1544, 126
        %v1566 = vpop.permute.xlu0 %1565
        %1567 = vrot.lane.b32.xlu0 %v1545, 126
        %v1568 = vpop.permute.xlu0 %1567
        %1569 = vrot.lane.b32.xlu0 %v1546, 126
        %v1570 = vpop.permute.xlu0 %1569
        %1575 = vrot.lane.b32.xlu0 %v1543, 125
        %v1576 = vpop.permute.xlu0 %1575
        %1577 = vrot.lane.b32.xlu0 %v1544, 125
        %v1578 = vpop.permute.xlu0 %1577
        %1579 = vrot.lane.b32.xlu0 %v1545, 125
        %v1580 = vpop.permute.xlu0 %1579
        %1581 = vrot.lane.b32.xlu0 %v1546, 125
        %v1582 = vpop.permute.xlu0 %1581
        %1587 = vrot.lane.b32.xlu0 %v1543, 124
        %v1588 = vpop.permute.xlu0 %1587
        %1589 = vrot.lane.b32.xlu0 %v1544, 124
        %v1590 = vpop.permute.xlu0 %1589
        %1591 = vrot.lane.b32.xlu0 %v1545, 124
        %v1592 = vpop.permute.xlu0 %1591
        %1593 = vrot.lane.b32.xlu0 %v1546, 124
        %v1594 = vpop.permute.xlu0 %1593
        %s1599 = scalar_lea.vmem %s4, 256
        %v1600 = vld [vmem:[%s1599] sm:$0xff]
        %v1601 = vld [vmem:[%s1599 + $0x8] sm:$0xff]
        %v1602 = vld [vmem:[%s1599 + $0x10] sm:$0xff]
        %v1603 = vld [vmem:[%s1599 + $0x18] sm:$0xff]
        %v1604 = vld [vmem:[%s1599 + $0x20] sm:$0xff]
        %v1605 = vld [vmem:[%s1599 + $0x28] sm:$0xff]
        %v1606 = vld [vmem:[%s1599 + $0x30] sm:$0xff]
        %v1607 = vld [vmem:[%s1599 + $0x38] sm:$0xff]
        %v1608 = vld [vmem:[%s1599 + $0x40] sm:$0xff]
        %v1609 = vld [vmem:[%s1599 + $0x48] sm:$0xff]
        %v1610 = vld [vmem:[%s1599 + $0x50] sm:$0xff]
        %v1611 = vld [vmem:[%s1599 + $0x58] sm:$0xff]
        %v1612 = vld [vmem:[%s1599 + $0x60] sm:$0xff]
        %v1613 = vld [vmem:[%s1599 + $0x68] sm:$0xff]
        %v1614 = vld [vmem:[%s1599 + $0x70] sm:$0xff]
        %v1615 = vld [vmem:[%s1599 + $0x78] sm:$0xff]
        %s1616 = scalar_lea.vmem %s5, 128
        %v1617 = vld [vmem:[%s1616] sm:$0xff]
        %v1618 = vld [vmem:[%s1616 + $0x8] sm:$0xff]
        %v1619 = vld [vmem:[%s1616 + $0x10] sm:$0xff]
        %v1620 = vld [vmem:[%s1616 + $0x18] sm:$0xff]
        %v1621 = vld [vmem:[%s1616 + $0x20] sm:$0xff]
        %v1622 = vld [vmem:[%s1616 + $0x28] sm:$0xff]
        %v1623 = vld [vmem:[%s1616 + $0x30] sm:$0xff]
        %v1624 = vld [vmem:[%s1616 + $0x38] sm:$0xff]
        %1626 = vset.pattern.permute.xlu0 0
        %1627 = vperm.xlu0 %1626, %v1617
        %v1628 = vpop.permute.xlu0 %1627
        %1631 = vset.pattern.permute.xlu0 0
        %1632 = vperm.xlu0 %1631, %v1618
        %v1633 = vpop.permute.xlu0 %1632
        %1636 = vset.pattern.permute.xlu0 0
        %1637 = vperm.xlu0 %1636, %v1619
        %v1638 = vpop.permute.xlu0 %1637
        %1641 = vset.pattern.permute.xlu0 0
        %1642 = vperm.xlu0 %1641, %v1620
        %v1643 = vpop.permute.xlu0 %1642
        %1646 = vset.pattern.permute.xlu0 0
        %1647 = vperm.xlu0 %1646, %v1621
        %v1648 = vpop.permute.xlu0 %1647
        %1651 = vset.pattern.permute.xlu0 0
        %1652 = vperm.xlu0 %1651, %v1622
        %v1653 = vpop.permute.xlu0 %1652
        %1656 = vset.pattern.permute.xlu0 0
        %1657 = vperm.xlu0 %1656, %v1623
        %v1658 = vpop.permute.xlu0 %1657
        %1661 = vset.pattern.permute.xlu0 0
        %1662 = vperm.xlu0 %1661, %v1624
        %v1663 = vpop.permute.xlu0 %1662
        %v1666 = vsel %vm678, %v1601, 0
        %v1669 = vsel %vm678, %v1603, 0
        %v1672 = vsel %vm678, %v1605, 0
        %v1675 = vsel %vm678, %v1607, 0
        %v1678 = vsel %vm678, %v1609, 0
        %v1681 = vsel %vm678, %v1611, 0
        %v1684 = vsel %vm678, %v1613, 0
        %v1687 = vsel %vm678, %v1615, 0
        %1689 = vmatprep.subr.mxu0 0.0
        %1690 = vmatpush1.msra.mxu0 %v1582
        %1691 = vmatprep.subr.mxu0 0.0
        %1692 = vmatpush1.msra.mxu0 %v1580
        %1693 = vmatprep.subr.mxu0 0.0
        %1694 = vmatpush1.msra.mxu0 %v1578
        %1695 = vmatprep.subr.mxu0 0.0
        %1696 = vmatpush1.msra.mxu0 %v1576
        %1697 = vmatprep.subr.mxu0 0.0
        %1698 = vmatpush1.msra.mxu0 %v1570
        %1699 = vmatprep.subr.mxu0 0.0
        %1700 = vmatpush1.msra.mxu0 %v1568
        %1701 = vmatprep.subr.mxu0 0.0
        %1702 = vmatpush1.msra.mxu0 %v1566
        %1703 = vmatprep.subr.mxu0 0.0
        %1704 = vmatpush1.msra.mxu0 %v1564
        %1705 = vmatprep.subr.mxu0 0.0
        %1706 = vmatpush1.msra.mxu0 %v1558
        %1707 = vmatprep.subr.mxu0 0.0
        %1708 = vmatpush1.msra.mxu0 %v1556
        %1709 = vmatprep.subr.mxu0 0.0
        %1710 = vmatpush1.msra.mxu0 %v1554
        %1711 = vmatprep.subr.mxu0 0.0
        %1712 = vmatpush1.msra.mxu0 %v1552
        %1713 = vmatprep.subr.mxu0 0.0
        %1714 = vmatpush1.msra.mxu0 %v1546
        %1715 = vmatprep.subr.mxu0 0.0
        %1716 = vmatpush1.msra.mxu0 %v1545
        %1717 = vmatprep.subr.mxu0 0.0
        %1718 = vmatpush1.msra.mxu0 %v1544
        %1719 = vmatprep.subr.mxu0 0.0
        %1720 = vmatpush1.msra.mxu0 %v1543
        %1721 = vmatprep.subr.mxu0 0.0
        %1722 = vmatpush2.msra.mxu0 0.0
        %1723 = vmatprep.subr.mxu0 0.0
        %1724 = vmatpush2.msra.mxu0 0.0
        %1725 = vmatprep.subr.mxu0 0.0
        %1726 = vmatpush2.msra.mxu0 0.0
        %1727 = vmatprep.subr.mxu0 0.0
        %1728 = vmatpush2.msra.mxu0 0.0
        %1729 = vmatprep.subr.mxu0 0.0
        %1730 = vmatpush2.msra.mxu0 0.0
        %1731 = vmatprep.subr.mxu0 0.0
        %1732 = vmatpush2.msra.mxu0 0.0
        %1733 = vmatprep.subr.mxu0 0.0
        %1734 = vmatpush2.msra.mxu0 0.0
        %1735 = vmatprep.subr.mxu0 0.0
        %1736 = vmatpush2.msra.mxu0 0.0
        %1737 = vmatprep.subr.mxu0 0.0
        %1738 = vmatpush2.msra.mxu0 0.0
        %1739 = vmatprep.subr.mxu0 0.0
        %1740 = vmatpush2.msra.mxu0 0.0
        %1741 = vmatprep.subr.mxu0 0.0
        %1742 = vmatpush2.msra.mxu0 0.0
        %1743 = vmatprep.subr.mxu0 0.0
        %1744 = vmatpush2.msra.mxu0 0.0
        %1745 = vmatprep.subr.mxu0 0.0
        %1746 = vmatpush2.msra.mxu0 %v1594
        %1747 = vmatprep.subr.mxu0 0.0
        %1748 = vmatpush2.msra.mxu0 %v1592
        %1749 = vmatprep.subr.mxu0 0.0
        %1750 = vmatpush2.msra.mxu0 %v1590
        %1751 = vmatprep.subr.mxu0 0.0
        %1752 = vmatpush2.msra.mxu0 %v1588
        %1753 = vmatprep.mubr.f32.mxu0 %v1666
        %1754 = vmatmul.mubr.f32.gmra.mxu0 %v1600
        %v1755 = vpop.f32.mrf.mxu0
        %v1756 = vadd.f32 %v1628, %v1755
        %v1757 = vpop.f32.mrf.mxu0
        %1758 = vmatprep.mubr.f32.mxu0 %v1669
        %1759 = vmatmul.mubr.f32.gmra.mxu0 %v1602
        %v1760 = vpop.f32.mrf.mxu0
        %v1761 = vadd.f32 %v1633, %v1760
        %v1762 = vpop.f32.mrf.mxu0
        %1763 = vmatprep.mubr.f32.mxu0 %v1672
        %1764 = vmatmul.mubr.f32.gmra.mxu0 %v1604
        %v1765 = vpop.f32.mrf.mxu0
        %v1766 = vadd.f32 %v1638, %v1765
        %v1767 = vpop.f32.mrf.mxu0
        %1768 = vmatprep.mubr.f32.mxu0 %v1675
        %1769 = vmatmul.mubr.f32.gmra.mxu0 %v1606
        %v1770 = vpop.f32.mrf.mxu0
        %v1771 = vadd.f32 %v1643, %v1770
        %v1772 = vpop.f32.mrf.mxu0
        %1773 = vmatprep.mubr.f32.mxu0 %v1678
        %1774 = vmatmul.mubr.f32.gmra.mxu0 %v1608
        %v1775 = vpop.f32.mrf.mxu0
        %v1776 = vadd.f32 %v1648, %v1775
        %v1777 = vpop.f32.mrf.mxu0
        %1778 = vmatprep.mubr.f32.mxu0 %v1681
        %1779 = vmatmul.mubr.f32.gmra.mxu0 %v1610
        %v1780 = vpop.f32.mrf.mxu0
        %v1781 = vadd.f32 %v1653, %v1780
        %v1782 = vpop.f32.mrf.mxu0
        %1783 = vmatprep.mubr.f32.mxu0 %v1684
        %1784 = vmatmul.mubr.f32.gmra.mxu0 %v1612
        %v1785 = vpop.f32.mrf.mxu0
        %v1786 = vadd.f32 %v1658, %v1785
        %v1787 = vpop.f32.mrf.mxu0
        %1788 = vmatprep.mubr.f32.mxu0 %v1687
        %1789 = vmatmul.mubr.f32.gmra.mxu0 %v1614
        %v1790 = vpop.f32.mrf.mxu0
        %v1791 = vadd.f32 %v1663, %v1790
        %v1792 = vpop.f32.mrf.mxu0
        %1793 = vdwg.mxu0
        %v1794 = vtanh.pop %v1756
        %v1795 = vtanh.pop %v1761
        %v1796 = vtanh.pop %v1766
        %v1797 = vtanh.pop %v1771
        %v1798 = vmul.f32 %v1776, 0.5
        %v1799 = vmul.f32 %v1781, 0.5
        %v1800 = vmul.f32 %v1786, 0.5
        %v1801 = vmul.f32 %v1791, 0.5
        %v1802 = vtanh.pop %v1798
        %v1803 = vtanh.pop %v1799
        %v1804 = vtanh.pop %v1800
        %v1805 = vtanh.pop %v1801
        %v1806 = vadd.f32 %v1802, 1.0
        %v1807 = vadd.f32 %v1803, 1.0
        %v1808 = vadd.f32 %v1804, 1.0
        %v1809 = vadd.f32 %v1805, 1.0
        %v1810 = vmul.f32 %v1806, 0.5
        %v1811 = vmul.f32 %v1807, 0.5
        %v1812 = vmul.f32 %v1808, 0.5
        %v1813 = vmul.f32 %v1809, 0.5
        %v1814 = vmul.f32 %v1794, %v1810
        %v1815 = vmul.f32 %v1795, %v1811
        %v1816 = vmul.f32 %v1796, %v1812
        %v1817 = vmul.f32 %v1797, %v1813
        %s1818 = scalar_lea.vmem %s6, 128
        %v1819 = vld [vmem:[%s1818] sm:$0xff]
        %v1820 = vld [vmem:[%s1818 + $0x8] sm:$0xff]
        %v1821 = vld [vmem:[%s1818 + $0x10] sm:$0xff]
        %v1822 = vld [vmem:[%s1818 + $0x18] sm:$0xff]
        %v1823 = vld [vmem:[%s1818 + $0x20] sm:$0xff]
        %v1824 = vld [vmem:[%s1818 + $0x28] sm:$0xff]
        %v1825 = vld [vmem:[%s1818 + $0x30] sm:$0xff]
        %v1826 = vld [vmem:[%s1818 + $0x38] sm:$0xff]
        %s1827 = scalar_lea.vmem %s7, 128
        %v1828 = vld [vmem:[%s1827] sm:$0xff]
        %v1829 = vld [vmem:[%s1827 + $0x8] sm:$0xff]
        %v1830 = vld [vmem:[%s1827 + $0x10] sm:$0xff]
        %v1831 = vld [vmem:[%s1827 + $0x18] sm:$0xff]
        %v1832 = vld [vmem:[%s1827 + $0x20] sm:$0xff]
        %v1833 = vld [vmem:[%s1827 + $0x28] sm:$0xff]
        %v1834 = vld [vmem:[%s1827 + $0x30] sm:$0xff]
        %v1835 = vld [vmem:[%s1827 + $0x38] sm:$0xff]
        %1837 = vset.pattern.permute.xlu0 0
        %1838 = vperm.xlu0 %1837, %v1828
        %v1839 = vpop.permute.xlu0 %1838
        %1842 = vset.pattern.permute.xlu0 0
        %1843 = vperm.xlu0 %1842, %v1829
        %v1844 = vpop.permute.xlu0 %1843
        %1847 = vset.pattern.permute.xlu0 0
        %1848 = vperm.xlu0 %1847, %v1830
        %v1849 = vpop.permute.xlu0 %1848
        %1852 = vset.pattern.permute.xlu0 0
        %1853 = vperm.xlu0 %1852, %v1831
        %v1854 = vpop.permute.xlu0 %1853
        %1857 = vset.pattern.permute.xlu0 0
        %1858 = vperm.xlu0 %1857, %v1832
        %v1859 = vpop.permute.xlu0 %1858
        %1862 = vset.pattern.permute.xlu0 0
        %1863 = vperm.xlu0 %1862, %v1833
        %v1864 = vpop.permute.xlu0 %1863
        %1867 = vset.pattern.permute.xlu0 0
        %1868 = vperm.xlu0 %1867, %v1834
        %v1869 = vpop.permute.xlu0 %1868
        %1872 = vset.pattern.permute.xlu0 0
        %1873 = vperm.xlu0 %1872, %v1835
        %v1874 = vpop.permute.xlu0 %1873
        %v1877 = vsel %vm678, %v1819, 0
        %v1880 = vsel %vm678, %v1820, 0
        %v1883 = vsel %vm678, %v1821, 0
        %v1886 = vsel %vm678, %v1822, 0
        %v1889 = vsel %vm678, %v1823, 0
        %v1892 = vsel %vm678, %v1824, 0
        %v1895 = vsel %vm678, %v1825, 0
        %v1898 = vsel %vm678, %v1826, 0
        %1900 = vmatprep.subr.mxu0 0.0
        %1901 = vmatpush1.msra.mxu0 0.0
        %1902 = vmatprep.subr.mxu0 0.0
        %1903 = vmatpush1.msra.mxu0 0.0
        %1904 = vmatprep.subr.mxu0 0.0
        %1905 = vmatpush1.msra.mxu0 0.0
        %1906 = vmatprep.subr.mxu0 0.0
        %1907 = vmatpush1.msra.mxu0 0.0
        %1908 = vmatprep.subr.mxu0 0.0
        %1909 = vmatpush1.msra.mxu0 0.0
        %1910 = vmatprep.subr.mxu0 0.0
        %1911 = vmatpush1.msra.mxu0 0.0
        %1912 = vmatprep.subr.mxu0 0.0
        %1913 = vmatpush1.msra.mxu0 0.0
        %1914 = vmatprep.subr.mxu0 0.0
        %1915 = vmatpush1.msra.mxu0 0.0
        %1916 = vmatprep.subr.mxu0 0.0
        %1917 = vmatpush1.msra.mxu0 0.0
        %1918 = vmatprep.subr.mxu0 0.0
        %1919 = vmatpush1.msra.mxu0 0.0
        %1920 = vmatprep.subr.mxu0 0.0
        %1921 = vmatpush1.msra.mxu0 0.0
        %1922 = vmatprep.subr.mxu0 0.0
        %1923 = vmatpush1.msra.mxu0 0.0
        %1924 = vmatprep.subr.mxu0 0.0
        %1925 = vmatpush1.msra.mxu0 %v1817
        %1926 = vmatprep.subr.mxu0 0.0
        %1927 = vmatpush1.msra.mxu0 %v1816
        %1928 = vmatprep.subr.mxu0 0.0
        %1929 = vmatpush1.msra.mxu0 %v1815
        %1930 = vmatprep.subr.mxu0 0.0
        %1931 = vmatpush1.msra.mxu0 %v1814
        %1932 = vmatprep.subr.mxu0 0.0
        %1933 = vmatpush2.msra.mxu0 0.0
        %1934 = vmatprep.subr.mxu0 0.0
        %1935 = vmatpush2.msra.mxu0 0.0
        %1936 = vmatprep.subr.mxu0 0.0
        %1937 = vmatpush2.msra.mxu0 0.0
        %1938 = vmatprep.subr.mxu0 0.0
        %1939 = vmatpush2.msra.mxu0 0.0
        %1940 = vmatprep.subr.mxu0 0.0
        %1941 = vmatpush2.msra.mxu0 0.0
        %1942 = vmatprep.subr.mxu0 0.0
        %1943 = vmatpush2.msra.mxu0 0.0
        %1944 = vmatprep.subr.mxu0 0.0
        %1945 = vmatpush2.msra.mxu0 0.0
        %1946 = vmatprep.subr.mxu0 0.0
        %1947 = vmatpush2.msra.mxu0 0.0
        %1948 = vmatprep.subr.mxu0 0.0
        %1949 = vmatpush2.msra.mxu0 0.0
        %1950 = vmatprep.subr.mxu0 0.0
        %1951 = vmatpush2.msra.mxu0 0.0
        %1952 = vmatprep.subr.mxu0 0.0
        %1953 = vmatpush2.msra.mxu0 0.0
        %1954 = vmatprep.subr.mxu0 0.0
        %1955 = vmatpush2.msra.mxu0 0.0
        %1956 = vmatprep.subr.mxu0 0.0
        %1957 = vmatpush2.msra.mxu0 0.0
        %1958 = vmatprep.subr.mxu0 0.0
        %1959 = vmatpush2.msra.mxu0 0.0
        %1960 = vmatprep.subr.mxu0 0.0
        %1961 = vmatpush2.msra.mxu0 0.0
        %1962 = vmatprep.subr.mxu0 0.0
        %1963 = vmatpush2.msra.mxu0 0.0
        %1964 = vmatprep.mubr.f32.mxu0 0.0
        %1965 = vmatmul.mubr.f32.gmra.mxu0 %v1877
        %v1966 = vpop.f32.mrf.mxu0
        %v1967 = vadd.f32 %v1839, %v1966
        %v1968 = vpop.f32.mrf.mxu0
        %1969 = vmatprep.mubr.f32.mxu0 0.0
        %1970 = vmatmul.mubr.f32.gmra.mxu0 %v1880
        %v1971 = vpop.f32.mrf.mxu0
        %v1972 = vadd.f32 %v1844, %v1971
        %v1973 = vpop.f32.mrf.mxu0
        %1974 = vmatprep.mubr.f32.mxu0 0.0
        %1975 = vmatmul.mubr.f32.gmra.mxu0 %v1883
        %v1976 = vpop.f32.mrf.mxu0
        %v1977 = vadd.f32 %v1849, %v1976
        %v1978 = vpop.f32.mrf.mxu0
        %1979 = vmatprep.mubr.f32.mxu0 0.0
        %1980 = vmatmul.mubr.f32.gmra.mxu0 %v1886
        %v1981 = vpop.f32.mrf.mxu0
        %v1982 = vadd.f32 %v1854, %v1981
        %v1983 = vpop.f32.mrf.mxu0
        %1984 = vmatprep.mubr.f32.mxu0 0.0
        %1985 = vmatmul.mubr.f32.gmra.mxu0 %v1889
        %v1986 = vpop.f32.mrf.mxu0
        %v1987 = vadd.f32 %v1859, %v1986
        %v1988 = vpop.f32.mrf.mxu0
        %1989 = vmatprep.mubr.f32.mxu0 0.0
        %1990 = vmatmul.mubr.f32.gmra.mxu0 %v1892
        %v1991 = vpop.f32.mrf.mxu0
        %v1992 = vadd.f32 %v1864, %v1991
        %v1993 = vpop.f32.mrf.mxu0
        %1994 = vmatprep.mubr.f32.mxu0 0.0
        %1995 = vmatmul.mubr.f32.gmra.mxu0 %v1895
        %v1996 = vpop.f32.mrf.mxu0
        %v1997 = vadd.f32 %v1869, %v1996
        %v1998 = vpop.f32.mrf.mxu0
        %1999 = vmatprep.mubr.f32.mxu0 0.0
        %2000 = vmatmul.mubr.f32.gmra.mxu0 %v1898
        %v2001 = vpop.f32.mrf.mxu0
        %v2002 = vadd.f32 %v1874, %v2001
        %v2003 = vpop.f32.mrf.mxu0
        %2004 = vdwg.mxu0
        %v2005 = vadd.f32 %v1515, %v1967
        %v2006 = vadd.f32 %v1516, %v1972
        %v2007 = vadd.f32 %v1517, %v1977
        %v2008 = vadd.f32 %v1518, %v1982
        %v2009 = vmul.f32 %v2005, %v400
        %v2010 = vmul.f32 %v2006, %v400
        %v2011 = vmul.f32 %v2007, %v400
        %v2012 = vmul.f32 %v2008, %v400
        %v2013 = vadd.f32 %v1519, %v1987
        %v2014 = vadd.f32 %v1520, %v1992
        %v2015 = vadd.f32 %v1521, %v1997
        %v2016 = vadd.f32 %v1522, %v2002
        %2021 = vrot.lane.b32.xlu0 %v2009, 2
        %v2022 = vpop.permute.xlu0 %2021
        %2023 = vrot.lane.b32.xlu0 %v2010, 2
        %v2024 = vpop.permute.xlu0 %2023
        %2025 = vrot.lane.b32.xlu0 %v2011, 2
        %v2026 = vpop.permute.xlu0 %2025
        %2027 = vrot.lane.b32.xlu0 %v2012, 2
        %v2028 = vpop.permute.xlu0 %2027
        %v2033 = vsel %vm552, 0.0, %v2022
        %v2034 = vsel %vm552, 0.0, %v2024
        %v2035 = vsel %vm552, 0.0, %v2026
        %v2036 = vsel %vm552, 0.0, %v2028
        %v2037 = vsel %vm557, %v2033, 0.0
        %v2038 = vsel %vm557, %v2034, 0.0
        %v2039 = vsel %vm557, %v2035, 0.0
        %v2040 = vsel %vm557, %v2036, 0.0
        %2045 = vrot.lane.b32.xlu0 %v2037, 127
        %v2046 = vpop.permute.xlu0 %2045
        %2047 = vrot.lane.b32.xlu0 %v2038, 127
        %v2048 = vpop.permute.xlu0 %2047
        %2049 = vrot.lane.b32.xlu0 %v2039, 127
        %v2050 = vpop.permute.xlu0 %2049
        %2051 = vrot.lane.b32.xlu0 %v2040, 127
        %v2052 = vpop.permute.xlu0 %2051
        %2057 = vrot.lane.b32.xlu0 %v2037, 126
        %v2058 = vpop.permute.xlu0 %2057
        %2059 = vrot.lane.b32.xlu0 %v2038, 126
        %v2060 = vpop.permute.xlu0 %2059
        %2061 = vrot.lane.b32.xlu0 %v2039, 126
        %v2062 = vpop.permute.xlu0 %2061
        %2063 = vrot.lane.b32.xlu0 %v2040, 126
        %v2064 = vpop.permute.xlu0 %2063
        %2069 = vrot.lane.b32.xlu0 %v2037, 125
        %v2070 = vpop.permute.xlu0 %2069
        %2071 = vrot.lane.b32.xlu0 %v2038, 125
        %v2072 = vpop.permute.xlu0 %2071
        %2073 = vrot.lane.b32.xlu0 %v2039, 125
        %v2074 = vpop.permute.xlu0 %2073
        %2075 = vrot.lane.b32.xlu0 %v2040, 125
        %v2076 = vpop.permute.xlu0 %2075
        %2081 = vrot.lane.b32.xlu0 %v2037, 124
        %v2082 = vpop.permute.xlu0 %2081
        %2083 = vrot.lane.b32.xlu0 %v2038, 124
        %v2084 = vpop.permute.xlu0 %2083
        %2085 = vrot.lane.b32.xlu0 %v2039, 124
        %v2086 = vpop.permute.xlu0 %2085
        %2087 = vrot.lane.b32.xlu0 %v2040, 124
        %v2088 = vpop.permute.xlu0 %2087
        %s2093 = scalar_lea.vmem %s4, 384
        %v2094 = vld [vmem:[%s2093] sm:$0xff]
        %v2095 = vld [vmem:[%s2093 + $0x8] sm:$0xff]
        %v2096 = vld [vmem:[%s2093 + $0x10] sm:$0xff]
        %v2097 = vld [vmem:[%s2093 + $0x18] sm:$0xff]
        %v2098 = vld [vmem:[%s2093 + $0x20] sm:$0xff]
        %v2099 = vld [vmem:[%s2093 + $0x28] sm:$0xff]
        %v2100 = vld [vmem:[%s2093 + $0x30] sm:$0xff]
        %v2101 = vld [vmem:[%s2093 + $0x38] sm:$0xff]
        %v2102 = vld [vmem:[%s2093 + $0x40] sm:$0xff]
        %v2103 = vld [vmem:[%s2093 + $0x48] sm:$0xff]
        %v2104 = vld [vmem:[%s2093 + $0x50] sm:$0xff]
        %v2105 = vld [vmem:[%s2093 + $0x58] sm:$0xff]
        %v2106 = vld [vmem:[%s2093 + $0x60] sm:$0xff]
        %v2107 = vld [vmem:[%s2093 + $0x68] sm:$0xff]
        %v2108 = vld [vmem:[%s2093 + $0x70] sm:$0xff]
        %v2109 = vld [vmem:[%s2093 + $0x78] sm:$0xff]
        %s2110 = scalar_lea.vmem %s5, 192
        %v2111 = vld [vmem:[%s2110] sm:$0xff]
        %v2112 = vld [vmem:[%s2110 + $0x8] sm:$0xff]
        %v2113 = vld [vmem:[%s2110 + $0x10] sm:$0xff]
        %v2114 = vld [vmem:[%s2110 + $0x18] sm:$0xff]
        %v2115 = vld [vmem:[%s2110 + $0x20] sm:$0xff]
        %v2116 = vld [vmem:[%s2110 + $0x28] sm:$0xff]
        %v2117 = vld [vmem:[%s2110 + $0x30] sm:$0xff]
        %v2118 = vld [vmem:[%s2110 + $0x38] sm:$0xff]
        %2120 = vset.pattern.permute.xlu0 0
        %2121 = vperm.xlu0 %2120, %v2111
        %v2122 = vpop.permute.xlu0 %2121
        %2125 = vset.pattern.permute.xlu0 0
        %2126 = vperm.xlu0 %2125, %v2112
        %v2127 = vpop.permute.xlu0 %2126
        %2130 = vset.pattern.permute.xlu0 0
        %2131 = vperm.xlu0 %2130, %v2113
        %v2132 = vpop.permute.xlu0 %2131
        %2135 = vset.pattern.permute.xlu0 0
        %2136 = vperm.xlu0 %2135, %v2114
        %v2137 = vpop.permute.xlu0 %2136
        %2140 = vset.pattern.permute.xlu0 0
        %2141 = vperm.xlu0 %2140, %v2115
        %v2142 = vpop.permute.xlu0 %2141
        %2145 = vset.pattern.permute.xlu0 0
        %2146 = vperm.xlu0 %2145, %v2116
        %v2147 = vpop.permute.xlu0 %2146
        %2150 = vset.pattern.permute.xlu0 0
        %2151 = vperm.xlu0 %2150, %v2117
        %v2152 = vpop.permute.xlu0 %2151
        %2155 = vset.pattern.permute.xlu0 0
        %2156 = vperm.xlu0 %2155, %v2118
        %v2157 = vpop.permute.xlu0 %2156
        %v2160 = vsel %vm678, %v2095, 0
        %v2163 = vsel %vm678, %v2097, 0
        %v2166 = vsel %vm678, %v2099, 0
        %v2169 = vsel %vm678, %v2101, 0
        %v2172 = vsel %vm678, %v2103, 0
        %v2175 = vsel %vm678, %v2105, 0
        %v2178 = vsel %vm678, %v2107, 0
        %v2181 = vsel %vm678, %v2109, 0
        %2183 = vmatprep.subr.mxu0 0.0
        %2184 = vmatpush1.msra.mxu0 %v2076
        %2185 = vmatprep.subr.mxu0 0.0
        %2186 = vmatpush1.msra.mxu0 %v2074
        %2187 = vmatprep.subr.mxu0 0.0
        %2188 = vmatpush1.msra.mxu0 %v2072
        %2189 = vmatprep.subr.mxu0 0.0
        %2190 = vmatpush1.msra.mxu0 %v2070
        %2191 = vmatprep.subr.mxu0 0.0
        %2192 = vmatpush1.msra.mxu0 %v2064
        %2193 = vmatprep.subr.mxu0 0.0
        %2194 = vmatpush1.msra.mxu0 %v2062
        %2195 = vmatprep.subr.mxu0 0.0
        %2196 = vmatpush1.msra.mxu0 %v2060
        %2197 = vmatprep.subr.mxu0 0.0
        %2198 = vmatpush1.msra.mxu0 %v2058
        %2199 = vmatprep.subr.mxu0 0.0
        %2200 = vmatpush1.msra.mxu0 %v2052
        %2201 = vmatprep.subr.mxu0 0.0
        %2202 = vmatpush1.msra.mxu0 %v2050
        %2203 = vmatprep.subr.mxu0 0.0
        %2204 = vmatpush1.msra.mxu0 %v2048
        %2205 = vmatprep.subr.mxu0 0.0
        %2206 = vmatpush1.msra.mxu0 %v2046
        %2207 = vmatprep.subr.mxu0 0.0
        %2208 = vmatpush1.msra.mxu0 %v2040
        %2209 = vmatprep.subr.mxu0 0.0
        %2210 = vmatpush1.msra.mxu0 %v2039
        %2211 = vmatprep.subr.mxu0 0.0
        %2212 = vmatpush1.msra.mxu0 %v2038
        %2213 = vmatprep.subr.mxu0 0.0
        %2214 = vmatpush1.msra.mxu0 %v2037
        %2215 = vmatprep.subr.mxu0 0.0
        %2216 = vmatpush2.msra.mxu0 0.0
        %2217 = vmatprep.subr.mxu0 0.0
        %2218 = vmatpush2.msra.mxu0 0.0
        %2219 = vmatprep.subr.mxu0 0.0
        %2220 = vmatpush2.msra.mxu0 0.0
        %2221 = vmatprep.subr.mxu0 0.0
        %2222 = vmatpush2.msra.mxu0 0.0
        %2223 = vmatprep.subr.mxu0 0.0
        %2224 = vmatpush2.msra.mxu0 0.0
        %2225 = vmatprep.subr.mxu0 0.0
        %2226 = vmatpush2.msra.mxu0 0.0
        %2227 = vmatprep.subr.mxu0 0.0
        %2228 = vmatpush2.msra.mxu0 0.0
        %2229 = vmatprep.subr.mxu0 0.0
        %2230 = vmatpush2.msra.mxu0 0.0
        %2231 = vmatprep.subr.mxu0 0.0
        %2232 = vmatpush2.msra.mxu0 0.0
        %2233 = vmatprep.subr.mxu0 0.0
        %2234 = vmatpush2.msra.mxu0 0.0
        %2235 = vmatprep.subr.mxu0 0.0
        %2236 = vmatpush2.msra.mxu0 0.0
        %2237 = vmatprep.subr.mxu0 0.0
        %2238 = vmatpush2.msra.mxu0 0.0
        %2239 = vmatprep.subr.mxu0 0.0
        %2240 = vmatpush2.msra.mxu0 %v2088
        %2241 = vmatprep.subr.mxu0 0.0
        %2242 = vmatpush2.msra.mxu0 %v2086
        %2243 = vmatprep.subr.mxu0 0.0
        %2244 = vmatpush2.msra.mxu0 %v2084
        %2245 = vmatprep.subr.mxu0 0.0
        %2246 = vmatpush2.msra.mxu0 %v2082
        %2247 = vmatprep.mubr.f32.mxu0 %v2160
        %2248 = vmatmul.mubr.f32.gmra.mxu0 %v2094
        %v2249 = vpop.f32.mrf.mxu0
        %v2250 = vadd.f32 %v2122, %v2249
        %v2251 = vpop.f32.mrf.mxu0
        %2252 = vmatprep.mubr.f32.mxu0 %v2163
        %2253 = vmatmul.mubr.f32.gmra.mxu0 %v2096
        %v2254 = vpop.f32.mrf.mxu0
        %v2255 = vadd.f32 %v2127, %v2254
        %v2256 = vpop.f32.mrf.mxu0
        %2257 = vmatprep.mubr.f32.mxu0 %v2166
        %2258 = vmatmul.mubr.f32.gmra.mxu0 %v2098
        %v2259 = vpop.f32.mrf.mxu0
        %v2260 = vadd.f32 %v2132, %v2259
        %v2261 = vpop.f32.mrf.mxu0
        %2262 = vmatprep.mubr.f32.mxu0 %v2169
        %2263 = vmatmul.mubr.f32.gmra.mxu0 %v2100
        %v2264 = vpop.f32.mrf.mxu0
        %v2265 = vadd.f32 %v2137, %v2264
        %v2266 = vpop.f32.mrf.mxu0
        %2267 = vmatprep.mubr.f32.mxu0 %v2172
        %2268 = vmatmul.mubr.f32.gmra.mxu0 %v2102
        %v2269 = vpop.f32.mrf.mxu0
        %v2270 = vadd.f32 %v2142, %v2269
        %v2271 = vpop.f32.mrf.mxu0
        %2272 = vmatprep.mubr.f32.mxu0 %v2175
        %2273 = vmatmul.mubr.f32.gmra.mxu0 %v2104
        %v2274 = vpop.f32.mrf.mxu0
        %v2275 = vadd.f32 %v2147, %v2274
        %v2276 = vpop.f32.mrf.mxu0
        %2277 = vmatprep.mubr.f32.mxu0 %v2178
        %2278 = vmatmul.mubr.f32.gmra.mxu0 %v2106
        %v2279 = vpop.f32.mrf.mxu0
        %v2280 = vadd.f32 %v2152, %v2279
        %v2281 = vpop.f32.mrf.mxu0
        %2282 = vmatprep.mubr.f32.mxu0 %v2181
        %2283 = vmatmul.mubr.f32.gmra.mxu0 %v2108
        %v2284 = vpop.f32.mrf.mxu0
        %v2285 = vadd.f32 %v2157, %v2284
        %v2286 = vpop.f32.mrf.mxu0
        %2287 = vdwg.mxu0
        %v2288 = vtanh.pop %v2250
        %v2289 = vtanh.pop %v2255
        %v2290 = vtanh.pop %v2260
        %v2291 = vtanh.pop %v2265
        %v2292 = vmul.f32 %v2270, 0.5
        %v2293 = vmul.f32 %v2275, 0.5
        %v2294 = vmul.f32 %v2280, 0.5
        %v2295 = vmul.f32 %v2285, 0.5
        %v2296 = vtanh.pop %v2292
        %v2297 = vtanh.pop %v2293
        %v2298 = vtanh.pop %v2294
        %v2299 = vtanh.pop %v2295
        %v2300 = vadd.f32 %v2296, 1.0
        %v2301 = vadd.f32 %v2297, 1.0
        %v2302 = vadd.f32 %v2298, 1.0
        %v2303 = vadd.f32 %v2299, 1.0
        %v2304 = vmul.f32 %v2300, 0.5
        %v2305 = vmul.f32 %v2301, 0.5
        %v2306 = vmul.f32 %v2302, 0.5
        %v2307 = vmul.f32 %v2303, 0.5
        %v2308 = vmul.f32 %v2288, %v2304
        %v2309 = vmul.f32 %v2289, %v2305
        %v2310 = vmul.f32 %v2290, %v2306
        %v2311 = vmul.f32 %v2291, %v2307
        %s2312 = scalar_lea.vmem %s6, 192
        %v2313 = vld [vmem:[%s2312] sm:$0xff]
        %v2314 = vld [vmem:[%s2312 + $0x8] sm:$0xff]
        %v2315 = vld [vmem:[%s2312 + $0x10] sm:$0xff]
        %v2316 = vld [vmem:[%s2312 + $0x18] sm:$0xff]
        %v2317 = vld [vmem:[%s2312 + $0x20] sm:$0xff]
        %v2318 = vld [vmem:[%s2312 + $0x28] sm:$0xff]
        %v2319 = vld [vmem:[%s2312 + $0x30] sm:$0xff]
        %v2320 = vld [vmem:[%s2312 + $0x38] sm:$0xff]
        %s2321 = scalar_lea.vmem %s7, 192
        %v2322 = vld [vmem:[%s2321] sm:$0xff]
        %v2323 = vld [vmem:[%s2321 + $0x8] sm:$0xff]
        %v2324 = vld [vmem:[%s2321 + $0x10] sm:$0xff]
        %v2325 = vld [vmem:[%s2321 + $0x18] sm:$0xff]
        %v2326 = vld [vmem:[%s2321 + $0x20] sm:$0xff]
        %v2327 = vld [vmem:[%s2321 + $0x28] sm:$0xff]
        %v2328 = vld [vmem:[%s2321 + $0x30] sm:$0xff]
        %v2329 = vld [vmem:[%s2321 + $0x38] sm:$0xff]
        %2331 = vset.pattern.permute.xlu0 0
        %2332 = vperm.xlu0 %2331, %v2322
        %v2333 = vpop.permute.xlu0 %2332
        %2336 = vset.pattern.permute.xlu0 0
        %2337 = vperm.xlu0 %2336, %v2323
        %v2338 = vpop.permute.xlu0 %2337
        %2341 = vset.pattern.permute.xlu0 0
        %2342 = vperm.xlu0 %2341, %v2324
        %v2343 = vpop.permute.xlu0 %2342
        %2346 = vset.pattern.permute.xlu0 0
        %2347 = vperm.xlu0 %2346, %v2325
        %v2348 = vpop.permute.xlu0 %2347
        %2351 = vset.pattern.permute.xlu0 0
        %2352 = vperm.xlu0 %2351, %v2326
        %v2353 = vpop.permute.xlu0 %2352
        %2355 = vset.pattern.permute.xlu0 0
        %2356 = vperm.xlu0 %2355, %v2327
        %v2357 = vpop.permute.xlu0 %2356
        %2359 = vset.pattern.permute.xlu0 0
        %2360 = vperm.xlu0 %2359, %v2328
        %v2361 = vpop.permute.xlu0 %2360
        %2363 = vset.pattern.permute.xlu0 0
        %2364 = vperm.xlu0 %2363, %v2329
        %v2365 = vpop.permute.xlu0 %2364
        %v2367 = vsel %vm678, %v2313, 0
        %v2370 = vsel %vm678, %v2314, 0
        %v2373 = vsel %vm678, %v2315, 0
        %v2376 = vsel %vm678, %v2316, 0
        %v2379 = vsel %vm678, %v2317, 0
        %v2382 = vsel %vm678, %v2318, 0
        %v2385 = vsel %vm678, %v2319, 0
        %v2388 = vsel %vm678, %v2320, 0
        %2390 = vmatprep.subr.mxu0 0.0
        %2391 = vmatpush1.msra.mxu0 0.0
        %2392 = vmatprep.subr.mxu0 0.0
        %2393 = vmatpush1.msra.mxu0 0.0
        %2394 = vmatprep.subr.mxu0 0.0
        %2395 = vmatpush1.msra.mxu0 0.0
        %2396 = vmatprep.subr.mxu0 0.0
        %2397 = vmatpush1.msra.mxu0 0.0
        %2398 = vmatprep.subr.mxu0 0.0
        %2399 = vmatpush1.msra.mxu0 0.0
        %2400 = vmatprep.subr.mxu0 0.0
        %2401 = vmatpush1.msra.mxu0 0.0
        %2402 = vmatprep.subr.mxu0 0.0
        %2403 = vmatpush1.msra.mxu0 0.0
        %2404 = vmatprep.subr.mxu0 0.0
        %2405 = vmatpush1.msra.mxu0 0.0
        %2406 = vmatprep.subr.mxu0 0.0
        %2407 = vmatpush1.msra.mxu0 0.0
        %2408 = vmatprep.subr.mxu0 0.0
        %2409 = vmatpush1.msra.mxu0 0.0
        %2410 = vmatprep.subr.mxu0 0.0
        %2411 = vmatpush1.msra.mxu0 0.0
        %2412 = vmatprep.subr.mxu0 0.0
        %2413 = vmatpush1.msra.mxu0 0.0
        %2414 = vmatprep.subr.mxu0 0.0
        %2415 = vmatpush1.msra.mxu0 %v2311
        %2416 = vmatprep.subr.mxu0 0.0
        %2417 = vmatpush1.msra.mxu0 %v2310
        %2418 = vmatprep.subr.mxu0 0.0
        %2419 = vmatpush1.msra.mxu0 %v2309
        %2420 = vmatprep.subr.mxu0 0.0
        %2421 = vmatpush1.msra.mxu0 %v2308
        %2422 = vmatprep.subr.mxu0 0.0
        %2423 = vmatpush2.msra.mxu0 0.0
        %2424 = vmatprep.subr.mxu0 0.0
        %2425 = vmatpush2.msra.mxu0 0.0
        %2426 = vmatprep.subr.mxu0 0.0
        %2427 = vmatpush2.msra.mxu0 0.0
        %2428 = vmatprep.subr.mxu0 0.0
        %2429 = vmatpush2.msra.mxu0 0.0
        %2430 = vmatprep.subr.mxu0 0.0
        %2431 = vmatpush2.msra.mxu0 0.0
        %2432 = vmatprep.subr.mxu0 0.0
        %2433 = vmatpush2.msra.mxu0 0.0
        %2434 = vmatprep.subr.mxu0 0.0
        %2435 = vmatpush2.msra.mxu0 0.0
        %2436 = vmatprep.subr.mxu0 0.0
        %2437 = vmatpush2.msra.mxu0 0.0
        %2438 = vmatprep.subr.mxu0 0.0
        %2439 = vmatpush2.msra.mxu0 0.0
        %2440 = vmatprep.subr.mxu0 0.0
        %2441 = vmatpush2.msra.mxu0 0.0
        %2442 = vmatprep.subr.mxu0 0.0
        %2443 = vmatpush2.msra.mxu0 0.0
        %2444 = vmatprep.subr.mxu0 0.0
        %2445 = vmatpush2.msra.mxu0 0.0
        %2446 = vmatprep.subr.mxu0 0.0
        %2447 = vmatpush2.msra.mxu0 0.0
        %2448 = vmatprep.subr.mxu0 0.0
        %2449 = vmatpush2.msra.mxu0 0.0
        %2450 = vmatprep.subr.mxu0 0.0
        %2451 = vmatpush2.msra.mxu0 0.0
        %2452 = vmatprep.subr.mxu0 0.0
        %2453 = vmatpush2.msra.mxu0 0.0
        %2454 = vmatprep.mubr.f32.mxu0 0.0
        %2455 = vmatmul.mubr.f32.gmra.mxu0 %v2367
        %v2456 = vpop.f32.mrf.mxu0
        %v2457 = vadd.f32 %v2333, %v2456
        %v2458 = vpop.f32.mrf.mxu0
        %2459 = vmatprep.mubr.f32.mxu0 0.0
        %2460 = vmatmul.mubr.f32.gmra.mxu0 %v2370
        %v2461 = vpop.f32.mrf.mxu0
        %v2462 = vadd.f32 %v2338, %v2461
        %v2463 = vpop.f32.mrf.mxu0
        %2464 = vmatprep.mubr.f32.mxu0 0.0
        %2465 = vmatmul.mubr.f32.gmra.mxu0 %v2373
        %v2466 = vpop.f32.mrf.mxu0
        %v2467 = vadd.f32 %v2343, %v2466
        %v2468 = vpop.f32.mrf.mxu0
        %2469 = vmatprep.mubr.f32.mxu0 0.0
        %2470 = vmatmul.mubr.f32.gmra.mxu0 %v2376
        %v2471 = vpop.f32.mrf.mxu0
        %v2472 = vadd.f32 %v2348, %v2471
        %v2473 = vpop.f32.mrf.mxu0
        %2474 = vmatprep.mubr.f32.mxu0 0.0
        %2475 = vmatmul.mubr.f32.gmra.mxu0 %v2379
        %v2476 = vpop.f32.mrf.mxu0
        %v2477 = vpop.f32.mrf.mxu0
        %2478 = vmatprep.mubr.f32.mxu0 0.0
        %2479 = vmatmul.mubr.f32.gmra.mxu0 %v2382
        %v2480 = vpop.f32.mrf.mxu0
        %v2481 = vpop.f32.mrf.mxu0
        %2482 = vmatprep.mubr.f32.mxu0 0.0
        %2483 = vmatmul.mubr.f32.gmra.mxu0 %v2385
        %v2484 = vpop.f32.mrf.mxu0
        %v2485 = vpop.f32.mrf.mxu0
        %2486 = vmatprep.mubr.f32.mxu0 0.0
        %2487 = vmatmul.mubr.f32.gmra.mxu0 %v2388
        %v2488 = vpop.f32.mrf.mxu0
        %v2489 = vpop.f32.mrf.mxu0
        %2490 = vdwg.mxu0
        %v2491 = vadd.f32 %v2013, %v2457
        %v2492 = vadd.f32 %v2014, %v2462
        %v2493 = vadd.f32 %v2015, %v2467
        %v2494 = vadd.f32 %v2016, %v2472
        %v2495 = vmul.f32 %v2491, %v400
        %v2496 = vmul.f32 %v2492, %v400
        %v2497 = vmul.f32 %v2493, %v400
        %v2498 = vmul.f32 %v2494, %v400
        %v2499 = vld [vmem:[%s8] sm:$0xf]
        %v2500 = vld [vmem:[%s9] sm:$0xf]
        %2502 = vset.pattern.permute.xlu0 0
        %2503 = vperm.xlu0 %2502, %v2500
        %v2504 = vpop.permute.xlu0 %2503
        %v2507 = vsel %vm678, %v2499, 0
        %2509 = vmatprep.subr.mxu0 0.0
        %2510 = vmatpush1.msra.mxu0 0.0
        %2511 = vmatprep.subr.mxu0 0.0
        %2512 = vmatpush1.msra.mxu0 0.0
        %2513 = vmatprep.subr.mxu0 0.0
        %2514 = vmatpush1.msra.mxu0 0.0
        %2515 = vmatprep.subr.mxu0 0.0
        %2516 = vmatpush1.msra.mxu0 0.0
        %2517 = vmatprep.subr.mxu0 0.0
        %2518 = vmatpush1.msra.mxu0 0.0
        %2519 = vmatprep.subr.mxu0 0.0
        %2520 = vmatpush1.msra.mxu0 0.0
        %2521 = vmatprep.subr.mxu0 0.0
        %2522 = vmatpush1.msra.mxu0 0.0
        %2523 = vmatprep.subr.mxu0 0.0
        %2524 = vmatpush1.msra.mxu0 0.0
        %2525 = vmatprep.subr.mxu0 0.0
        %2526 = vmatpush1.msra.mxu0 0.0
        %2527 = vmatprep.subr.mxu0 0.0
        %2528 = vmatpush1.msra.mxu0 0.0
        %2529 = vmatprep.subr.mxu0 0.0
        %2530 = vmatpush1.msra.mxu0 0.0
        %2531 = vmatprep.subr.mxu0 0.0
        %2532 = vmatpush1.msra.mxu0 0.0
        %2533 = vmatprep.subr.mxu0 0.0
        %2534 = vmatpush1.msra.mxu0 %v2498
        %2535 = vmatprep.subr.mxu0 0.0
        %2536 = vmatpush1.msra.mxu0 %v2497
        %2537 = vmatprep.subr.mxu0 0.0
        %2538 = vmatpush1.msra.mxu0 %v2496
        %2539 = vmatprep.subr.mxu0 0.0
        %2540 = vmatpush1.msra.mxu0 %v2495
        %2541 = vmatprep.subr.mxu0 0.0
        %2542 = vmatpush2.msra.mxu0 0.0
        %2543 = vmatprep.subr.mxu0 0.0
        %2544 = vmatpush2.msra.mxu0 0.0
        %2545 = vmatprep.subr.mxu0 0.0
        %2546 = vmatpush2.msra.mxu0 0.0
        %2547 = vmatprep.subr.mxu0 0.0
        %2548 = vmatpush2.msra.mxu0 0.0
        %2549 = vmatprep.subr.mxu0 0.0
        %2550 = vmatpush2.msra.mxu0 0.0
        %2551 = vmatprep.subr.mxu0 0.0
        %2552 = vmatpush2.msra.mxu0 0.0
        %2553 = vmatprep.subr.mxu0 0.0
        %2554 = vmatpush2.msra.mxu0 0.0
        %2555 = vmatprep.subr.mxu0 0.0
        %2556 = vmatpush2.msra.mxu0 0.0
        %2557 = vmatprep.subr.mxu0 0.0
        %2558 = vmatpush2.msra.mxu0 0.0
        %2559 = vmatprep.subr.mxu0 0.0
        %2560 = vmatpush2.msra.mxu0 0.0
        %2561 = vmatprep.subr.mxu0 0.0
        %2562 = vmatpush2.msra.mxu0 0.0
        %2563 = vmatprep.subr.mxu0 0.0
        %2564 = vmatpush2.msra.mxu0 0.0
        %2565 = vmatprep.subr.mxu0 0.0
        %2566 = vmatpush2.msra.mxu0 0.0
        %2567 = vmatprep.subr.mxu0 0.0
        %2568 = vmatpush2.msra.mxu0 0.0
        %2569 = vmatprep.subr.mxu0 0.0
        %2570 = vmatpush2.msra.mxu0 0.0
        %2571 = vmatprep.subr.mxu0 0.0
        %2572 = vmatpush2.msra.mxu0 0.0
        %2573 = vmatprep.mubr.f32.mxu0 0.0
        %2574 = vmatmul.mubr.f32.gmra.mxu0 %v2507
        %v2575 = vpop.f32.mrf.mxu0
        %v2576 = vadd.f32 %v2504, %v2575
        %v2577 = vpop.f32.mrf.mxu0
        %2578 = vdwg.mxu0
        %v2579 = vmul.f32 %v2576, %v400
        %v2580 = vmul.f32 %v394, %v400
        %v2581 = vadd.f32 %v2579, %v2580
        %vm2582 = vcmask 125952
        %2583 = vst.msk [vmem:[%s388] sm:$0xf] %vm2582, %v2581
        %s2584 = sand.u32 %s255, 1
        %s2585 = scalar_lea.sflag [#allocation4], %s2584
        %s2586 = sand.u32 %s255, 1
        %s2587 = smul.addr %s2586, 4
        %s2588 = scalar_lea.vmem [#allocation5], %s2587
        // Predicated region
        $region65: #{tpu_custom_call.1} parent=59 // pred_check
          %p2589 = pneg %p265
        $region66: #{tpu_custom_call.1} parent=59 // pred_check_branch
          %2591 = sbr.rel (%p2589) target = $region68
        $region67: #{tpu_custom_call.1} parent=59 // pred_region
          %s2593 = ssub.s32 64, 64
          %2594 = vsyncadd %s2585, %s2593
          %s2595 = smul.addr %s27, 2
          %s2596 = sadd.s32 1, %s2595
          %s2597 = smul.addr %s2596, 64
          %s2598 = scalar_lea.hbm %s10, %s2597
          %s2600 = sshll.u32 %s2588, 4
          %s2601 = int_to_ptr.vmem [resolvable:$true] %s2600
          %2603 = dma.vmem_to_hbm [thread:$0]  %s2601, 64, %s2598, %s2585
        $region68: #{tpu_custom_call.1} parent=59 // pred_fallthru
          _
      $region60: #{tpu_custom_call.1} parent=5 // pred_fallthru
        _
      %p2604 = scmp.le.s32.totalorder 2, %s22
      // Predicated region
      $region69: #{tpu_custom_call.1} parent=5 // pred_check
        %p2605 = pneg %p2604
      $region70: #{tpu_custom_call.1} parent=5 // pred_check_branch
        %2607 = sbr.rel (%p2605) target = $region72
      $region71: #{tpu_custom_call.1} parent=5 // pred_region
        %s2608 = ssub.s32 %s22, 2
        // Predicated region
        $region73: #{tpu_custom_call.1} parent=71 // pred_check
          %p2609 = pneg %p271
        $region74: #{tpu_custom_call.1} parent=71 // pred_check_branch
          %2611 = sbr.rel (%p2609) target = $region76
        $region75: #{tpu_custom_call.1} parent=71 // pred_region
          %s2612 = sand.u32 %s256, 1
          %s2613 = scalar_lea.sflag [#allocation4], %s2612
          %s2614 = sand.u32 %s256, 1
          %s2615 = smul.addr %s2614, 4
          %s2616 = scalar_lea.vmem [#allocation5], %s2615
          %2617 = dma.done %s2613, 64
        $region76: #{tpu_custom_call.1} parent=71 // pred_fallthru
          _
      $region72: #{tpu_custom_call.1} parent=5 // pred_fallthru
        _
    $region6: #{tpu_custom_call.1} parent=1 // loop_footer
      %s26 = sadd.s32 1, %s22
    $region7: #{tpu_custom_call.1} parent=1 // loop_footer_branch
      %21 = sbr.rel target = $region3
    $region8: #{tpu_custom_call.1} parent=1 // loop_exit
      _
    %2618 = vsyncpa [#allocation3], 1
    %s2619 = scalar_lea.sflag [#allocation3], 1
    %2620 = vsyncpa %s2619, 1
    %2621 = vsyncpa [#allocation4], 1
    %s2622 = scalar_lea.sflag [#allocation4], 1
    %2623 = vsyncpa %s2622, 1

</llo_original>
